<compile_context>
chip_gen: v5e
topology: v5e:2x2
jax: 0.10.0
libtpu: 0.0.40
codegen_flags: <defaults>
</compile_context>

<pallas_src>
import functools

import jax
import jax.numpy as jnp
from jax import lax
from jax.experimental import pallas as pl
from jax.experimental.pallas import tpu as pltpu

H = 64      # LSTM hidden size
I = 2       # LSTM input size
OUT = 2     # fc output size


def lstm_fc_kernel(g0init_ref, slab_ref, wbig_ref, wfc_ref, bfc_ref, out_ref,
                   h_cat, c_cat, *, t_total, unroll):
    """Wavefront-fused 2-layer LSTM recurrence + final Linear on the last hidden state.

    g0init_ref: (B, 8H)    packed pre-activation for layer-0 at t=0 (recurrent term is 0)
    slab_ref:   (Tc, B,8H) streamed addend: row j holds proj0[t=j+1] in the layer-0 gate
                           slots and (b_ih1+b_hh1) in the layer-1 gate slots
                           (last valid row: zeros in layer-0 slots)
    wbig_ref:   (2H, 8H)   block-structured fused weight, columns [i0 i1 f0 f1 g0 g1 o0 o1]
    wfc_ref:    (H, OUT), bfc_ref: (1, OUT)
    out_ref:    (B, OUT)
    h_cat/c_cat:(B, 2H)    packed recurrent state [layer0 | layer1], persists across chunks
    """
    chunk = pl.program_id(0)
    tc = slab_ref.shape[0]
    B = h_cat.shape[0]

    def packed_step(g, c_prev):
        # Packed gate layout: [i0 i1 | f0 f1 | g0 g1 | o0 o1], each block 2H=128 lanes.
        i_g = jax.nn.sigmoid(g[:, 0:2 * H])
        f_g = jax.nn.sigmoid(g[:, 2 * H:4 * H])
        g_g = jnp.tanh(g[:, 4 * H:6 * H])
        o_g = jax.nn.sigmoid(g[:, 6 * H:8 * H])
        c_new = f_g * c_prev + i_g * g_g
        h_new = o_g * jnp.tanh(c_new)
        return h_new, c_new

    # ---- Prologue (first chunk only): layer-0 cell at t=0; layer-1 state starts at 0.
    @pl.when(chunk == 0)
    def _prologue():
        h_new, c_new = packed_step(g0init_ref[...], jnp.zeros((B, 2 * H), jnp.float32))
        lane = lax.broadcasted_iota(jnp.int32, (B, 2 * H), 1)
        keep = lane < H                         # keep layer-0 half, zero bogus layer-1 half
        h_cat[...] = jnp.where(keep, h_new, 0.0)
        c_cat[...] = jnp.where(keep, c_new, 0.0)

    # ---- Wavefront loop: iteration j computes layer-1 of step j AND layer-0 of step j+1
    #      with a single fused matmul on h_cat = [h0_j | h1_{j-1}].
    def body(l, carry):
        @pl.when(chunk * tc + l < t_total)      # skip padding rows in the last chunk
        def _():
            fused = jnp.dot(h_cat[...], wbig_ref[...],
                            preferred_element_type=jnp.float32)       # (B, 8H)
            g = fused + slab_ref[l]
            h_new, c_new = packed_step(g, c_cat[...])
            h_cat[...] = h_new                  # = [h0_{j+1} | h1_j]
            c_cat[...] = c_new
        return carry

    # TODO(synk): nn.LSTM dropout=0.3 between layers is training-only; eval semantics here.
    lax.fori_loop(0, tc, body, 0, unroll=unroll)

    # ---- Epilogue (last chunk): fc on the last layer-1 hidden state.
    @pl.when(chunk == pl.num_programs(0) - 1)
    def _epilogue():
        out_ref[...] = (jnp.dot(h_cat[:, H:2 * H], wfc_ref[...],
                                preferred_element_type=jnp.float32)
                        + bfc_ref[...])


def rnn_forward(x_ncl, params, *, t_chunk=256):
    """x_ncl: (B, 2, T) float32 — same layout the PyTorch module receives."""
    B, C, T = x_ncl.shape
    assert C == I and T >= 1
    x_tbi = jnp.transpose(x_ncl, (2, 0, 1)).astype(jnp.float32)       # (T, B, I)

    # Hoisted layer-0 input projection: one (T*B, I)@(I, 4H) matmul, b0 folded in.
    proj0 = (x_tbi.reshape(T * B, I) @ params["wih0_t"]
             + params["b0"]).reshape(T, B, 4, H)

    # Interleave into the packed 8H gate layout [i0 i1 f0 f1 g0 g1 o0 o1] with layer-1's
    # bias pre-filled in the layer-1 slots (one lane-dense add per step in the kernel).
    b1 = params["b1"].reshape(1, 1, 4, H)
    packed = jnp.stack([proj0, jnp.broadcast_to(b1, proj0.shape)], axis=3)
    packed = packed.reshape(T, B, 8 * H)                              # (T, B, 8H)

    g0init = packed[0]                                                # (B, 8H)
    # Wavefront shift: slab[j] is consumed at iteration j (layer-1 of step j, layer-0 of
    # step j+1); the final row only needs b1 in the layer-1 slots (layer-0 part discarded).
    tail = jnp.stack([jnp.zeros((1, B, 4, H), jnp.float32),
                      jnp.broadcast_to(b1, (1, B, 4, H))], axis=3).reshape(1, B, 8 * H)
    slab = jnp.concatenate([packed[1:], tail], axis=0)                # (T, B, 8H)

    # Stream the slab over a T grid so VMEM residency is bounded on every generation.
    tc = min(T, t_chunk)
    n_chunks = pl.cdiv(T, tc)
    t_pad = n_chunks * tc
    if t_pad != T:
        slab = jnp.concatenate(
            [slab, jnp.zeros((t_pad - T, B, 8 * H), jnp.float32)], axis=0)

    unroll = True if tc <= 16 else 4
    kernel = functools.partial(lstm_fc_kernel, t_total=T, unroll=unroll)

    return pl.pallas_call(
        kernel,
        out_shape=jax.ShapeDtypeStruct((B, OUT), jnp.float32),
        grid=(n_chunks,),
        in_specs=[
            pl.BlockSpec((B, 8 * H), lambda i: (0, 0)),               # g0init (resident)
            pl.BlockSpec((tc, B, 8 * H), lambda i: (i, 0, 0)),        # slab (streamed)
            pl.BlockSpec((2 * H, 8 * H), lambda i: (0, 0)),           # wbig
            pl.BlockSpec((H, OUT), lambda i: (0, 0)),                 # wfc
            pl.BlockSpec((1, OUT), lambda i: (0, 0)),                 # bfc
        ],
        out_specs=pl.BlockSpec((B, OUT), lambda i: (0, 0)),
        scratch_shapes=[
            pltpu.VMEM((B, 2 * H), jnp.float32),                      # h_cat = [h0 | h1]
            pltpu.VMEM((B, 2 * H), jnp.float32),                      # c_cat = [c0 | c1]
        ],
        compiler_params=pltpu.CompilerParams(
            dimension_semantics=("arbitrary",)),
    )(g0init, slab, params["wbig"], params["wfc_t"], params["bfc"])


def init_params(key):
    """Deterministic synthetic parameters, PyTorch-style U(-1/sqrt(H), 1/sqrt(H))."""
    k = 1.0 / jnp.sqrt(jnp.float32(H))
    keys = jax.random.split(key, 10)

    def u(kk, shape):
        return jax.random.uniform(kk, shape, jnp.float32, -k, k)

    # PyTorch stores weight_ih_l0: (4H, I) etc.; gate order i, f, g, o along 4H.
    w_ih0 = u(keys[0], (4 * H, I))
    w_hh0 = u(keys[1], (4 * H, H))
    b_ih0 = u(keys[2], (4 * H,))
    b_hh0 = u(keys[3], (4 * H,))
    w_ih1 = u(keys[4], (4 * H, H))
    w_hh1 = u(keys[5], (4 * H, H))
    b_ih1 = u(keys[6], (4 * H,))
    b_hh1 = u(keys[7], (4 * H,))
    w_fc = u(keys[8], (OUT, H))
    b_fc = u(keys[9], (OUT,))

    whh0_t = w_hh0.T
    wih1_t = w_ih1.T
    whh1_t = w_hh1.T

    # Block-structured wavefront weight (2H, 8H): rows 0..H-1 multiply h0, rows H..2H-1
    # multiply h1.  Per gate g: layer-0 column block = [whh0_t[:,g] ; 0] (recurrent gates
    # for step t+1), layer-1 column block = [wih1_t[:,g] ; whh1_t[:,g]] (gates for step t).
    zeros_h = jnp.zeros((H, H), jnp.float32)
    cols = []
    for g in range(4):
        sl = slice(g * H, (g + 1) * H)
        cols.append(jnp.concatenate([whh0_t[:, sl], zeros_h], axis=0))
        cols.append(jnp.concatenate([wih1_t[:, sl], whh1_t[:, sl]], axis=0))
    wbig = jnp.concatenate(cols, axis=1)                              # (2H, 8H)

    return {
        "wih0_t": w_ih0.T,
        "whh0_t": whh0_t,
        "b0": (b_ih0 + b_hh0).reshape(1, 4 * H),
        "wih1_t": wih1_t,
        "whh1_t": whh1_t,
        "b1": (b_ih1 + b_hh1).reshape(1, 4 * H),
        "wbig": wbig,
        "wfc_t": w_fc.T,
        "bfc": b_fc.reshape(1, OUT),
    }


def rnn_forward_ref(x_ncl, params):
    """Pure-JAX reference (same eval semantics) for correctness checking."""
    B, C, T = x_ncl.shape
    x = jnp.transpose(x_ncl, (0, 2, 1)).astype(jnp.float32)           # (B, T, I)

    def cell(xt, h, c, wih_t, whh_t, b):
        g = xt @ wih_t + h @ whh_t + b
        i_g = jax.nn.sigmoid(g[:, :H])
        f_g = jax.nn.sigmoid(g[:, H:2 * H])
        g_g = jnp.tanh(g[:, 2 * H:3 * H])
        o_g = jax.nn.sigmoid(g[:, 3 * H:])
        c = f_g * c + i_g * g_g
        h = o_g * jnp.tanh(c)
        return h, c

    def step(carry, xt):
        h0, c0, h1, c1 = carry
        h0, c0 = cell(xt, h0, c0, params["wih0_t"], params["whh0_t"], params["b0"])
        h1, c1 = cell(h0, h1, c1, params["wih1_t"], params["whh1_t"], params["b1"])
        return (h0, c0, h1, c1), None

    z = jnp.zeros((B, H), jnp.float32)
    (h0, c0, h1, c1), _ = lax.scan(step, (z, z, z, z),
                                   jnp.transpose(x, (1, 0, 2)))       # (T, B, I)
    return h1 @ params["wfc_t"] + params["bfc"]


if __name__ == "__main__":
    key = jax.random.PRNGKey(0)
    pkey, xkey = jax.random.split(key)
    params = init_params(pkey)

    B, T = 2, 8
    x = jax.random.normal(xkey, (B, I, T), jnp.float32)  # (B, 2, T) like the PyTorch input

    out = rnn_forward(x, params)
    out = jax.block_until_ready(out)

    ref = rnn_forward_ref(x, params)
    assert out.shape == (B, OUT)
    # Fused wavefront matmul / folded-bias accumulation order differs from the naive
    # reference, so keep a slightly loose (still f32) tolerance.
    assert jnp.allclose(out, ref, atol=1e-4, rtol=1e-4), (out, ref)

    print("KERNEL_OK")
</pallas_src>

<mosaic_0001>
module attributes {stable_mosaic.version = 11 : i64} {
  func.func @lstm_fc_kernel(%arg0: i32, %arg1: memref<2x512xf32, #tpu.memory_space<vmem>>, %arg2: memref<8x2x512xf32, #tpu.memory_space<vmem>>, %arg3: memref<128x512xf32, #tpu.memory_space<vmem>>, %arg4: memref<64x2xf32, #tpu.memory_space<vmem>>, %arg5: memref<1x2xf32, #tpu.memory_space<vmem>>, %arg6: memref<2x2xf32, #tpu.memory_space<vmem>>, %arg7: memref<2x128xf32, #tpu.memory_space<vmem>>, %arg8: memref<2x128xf32, #tpu.memory_space<vmem>>) attributes {dimension_semantics = [#tpu.dimension_semantics<arbitrary>], iteration_bounds = array<i64: 1>, scalar_prefetch = 0 : i64, scratch_operands = 2 : i64, tpu.core_type = #tpu.core_type<tc>, window_params = [{pipeline_mode = #tpu.pipeline_mode<synchronous>, transform_indices = @transform_0, window_bounds = array<i64: 2, 512>}, {transform_indices = @transform_1, window_bounds = array<i64: 8, 2, 512>}, {pipeline_mode = #tpu.pipeline_mode<synchronous>, transform_indices = @transform_2, window_bounds = array<i64: 128, 512>}, {pipeline_mode = #tpu.pipeline_mode<synchronous>, transform_indices = @transform_3, window_bounds = array<i64: 64, 2>}, {pipeline_mode = #tpu.pipeline_mode<synchronous>, transform_indices = @transform_4, window_bounds = array<i64: 1, 2>}, {pipeline_mode = #tpu.pipeline_mode<synchronous>, transform_indices = @transform_5, window_bounds = array<i64: 2, 2>}]} {
    %c0_i32 = arith.constant 0 : i32
    %0 = arith.cmpi eq, %arg0, %c0_i32 : i32
    %1 = arith.extui %0 : i1 to i32
    %c0_i32_0 = arith.constant 0 : i32
    %2 = arith.cmpi ne, %1, %c0_i32_0 : i32
    scf.if %2 {
      %c0 = arith.constant 0 : index
      %c0_28 = arith.constant 0 : index
      %46 = vector.load %arg1[%c0, %c0_28] : memref<2x512xf32, #tpu.memory_space<vmem>>, vector<2x512xf32>
      %cst = arith.constant 0.000000e+00 : f32
      %47 = vector.broadcast %cst : f32 to vector<2x128xf32>
      %48 = vector.extract_strided_slice %46 {offsets = [0, 0], sizes = [2, 128], strides = [1, 1]} : vector<2x512xf32> to vector<2x128xf32>
      %49 = arith.negf %48 : vector<2x128xf32>
      %50 = math.exp %49 : vector<2x128xf32>
      %cst_29 = arith.constant 1.000000e+00 : f32
      %51 = vector.broadcast %cst_29 : f32 to vector<2x128xf32>
      %52 = arith.addf %51, %50 : vector<2x128xf32>
      %53 = arith.divf %51, %52 : vector<2x128xf32>
      %54 = vector.extract_strided_slice %46 {offsets = [0, 128], sizes = [2, 128], strides = [1, 1]} : vector<2x512xf32> to vector<2x128xf32>
      %55 = arith.negf %54 : vector<2x128xf32>
      %56 = math.exp %55 : vector<2x128xf32>
      %cst_30 = arith.constant 1.000000e+00 : f32
      %57 = vector.broadcast %cst_30 : f32 to vector<2x128xf32>
      %58 = arith.addf %57, %56 : vector<2x128xf32>
      %59 = arith.divf %57, %58 : vector<2x128xf32>
      %60 = vector.extract_strided_slice %46 {offsets = [0, 256], sizes = [2, 128], strides = [1, 1]} : vector<2x512xf32> to vector<2x128xf32>
      %61 = math.tanh %60 : vector<2x128xf32>
      %62 = vector.extract_strided_slice %46 {offsets = [0, 384], sizes = [2, 128], strides = [1, 1]} : vector<2x512xf32> to vector<2x128xf32>
      %63 = arith.negf %62 : vector<2x128xf32>
      %64 = math.exp %63 : vector<2x128xf32>
      %cst_31 = arith.constant 1.000000e+00 : f32
      %65 = vector.broadcast %cst_31 : f32 to vector<2x128xf32>
      %66 = arith.addf %65, %64 : vector<2x128xf32>
      %67 = arith.divf %65, %66 : vector<2x128xf32>
      %68 = arith.mulf %59, %47 : vector<2x128xf32>
      %69 = arith.mulf %53, %61 : vector<2x128xf32>
      %70 = arith.addf %68, %69 : vector<2x128xf32>
      %71 = math.tanh %70 : vector<2x128xf32>
      %72 = arith.mulf %67, %71 : vector<2x128xf32>
      %73 = tpu.iota {dimensions = array<i32: 1>} : vector<2x128xi32>
      %c64_i32 = arith.constant 64 : i32
      %74 = vector.broadcast %c64_i32 : i32 to vector<2x128xi32>
      %75 = arith.cmpi slt, %73, %74 : vector<2x128xi32>
      %cst_32 = arith.constant 0.000000e+00 : f32
      %76 = vector.broadcast %cst_32 : f32 to vector<2x128xf32>
      %77 = arith.select %75, %72, %76 : vector<2x128xi1>, vector<2x128xf32>
      %c0_33 = arith.constant 0 : index
      %c0_34 = arith.constant 0 : index
      %78 = vector.load %arg7[%c0_33, %c0_34] : memref<2x128xf32, #tpu.memory_space<vmem>>, vector<2x128xf32>
      tpu.vector_store %arg7[%c0_33, %c0_34], %77 {strides = array<i32>} : memref<2x128xf32, #tpu.memory_space<vmem>>, vector<2x128xf32>,
      %cst_35 = arith.constant 0.000000e+00 : f32
      %79 = vector.broadcast %cst_35 : f32 to vector<2x128xf32>
      %80 = arith.select %75, %70, %79 : vector<2x128xi1>, vector<2x128xf32>
      %c0_36 = arith.constant 0 : index
      %c0_37 = arith.constant 0 : index
      %81 = vector.load %arg8[%c0_36, %c0_37] : memref<2x128xf32, #tpu.memory_space<vmem>>, vector<2x128xf32>
      tpu.vector_store %arg8[%c0_36, %c0_37], %80 {strides = array<i32>} : memref<2x128xf32, #tpu.memory_space<vmem>>, vector<2x128xf32>,
    } else {
    }
    %c0_i32_1 = arith.constant 0 : i32
    %c8_i32 = arith.constant 8 : i32
    %3 = arith.muli %arg0, %c8_i32 : i32
    %4 = arith.addi %3, %c0_i32_1 : i32
    %c8_i32_2 = arith.constant 8 : i32
    %5 = arith.cmpi slt, %4, %c8_i32_2 : i32
    %6 = arith.extui %5 : i1 to i32
    %c0_i32_3 = arith.constant 0 : i32
    %7 = arith.cmpi ne, %6, %c0_i32_3 : i32
    scf.if %7 {
      %c0 = arith.constant 0 : index
      %c0_28 = arith.constant 0 : index
      %46 = vector.load %arg7[%c0, %c0_28] : memref<2x128xf32, #tpu.memory_space<vmem>>, vector<2x128xf32>
      %c0_29 = arith.constant 0 : index
      %c0_30 = arith.constant 0 : index
      %47 = vector.load %arg3[%c0_29, %c0_30] : memref<128x512xf32, #tpu.memory_space<vmem>>, vector<128x512xf32>
      %cst = arith.constant dense<0.000000e+00> : vector<2x512xf32>
      %48 = tpu.matmul %46, %47, %cst {dimension_numbers = #tpu.dot_dimension_numbers<[1], [0], [0], [1], [0, 0, 1, 1], [], []>} : vector<2x128xf32>, vector<128x512xf32>, vector<2x512xf32> -> vector<2x512xf32>
      %49 = arith.index_cast %c0_i32_1 : i32 to index
      %c0_31 = arith.constant 0 : index
      %c0_32 = arith.constant 0 : index
      %50 = vector.load %arg2[%49, %c0_31, %c0_32] : memref<8x2x512xf32, #tpu.memory_space<vmem>>, vector<1x2x512xf32>
      %51 = vector.shape_cast %50 : vector<1x2x512xf32> to vector<2x512xf32>
      %52 = arith.addf %48, %51 : vector<2x512xf32>
      %c0_33 = arith.constant 0 : index
      %c0_34 = arith.constant 0 : index
      %53 = vector.load %arg8[%c0_33, %c0_34] : memref<2x128xf32, #tpu.memory_space<vmem>>, vector<2x128xf32>
      %54 = vector.extract_strided_slice %52 {offsets = [0, 0], sizes = [2, 128], strides = [1, 1]} : vector<2x512xf32> to vector<2x128xf32>
      %55 = arith.negf %54 : vector<2x128xf32>
      %56 = math.exp %55 : vector<2x128xf32>
      %cst_35 = arith.constant 1.000000e+00 : f32
      %57 = vector.broadcast %cst_35 : f32 to vector<2x128xf32>
      %58 = arith.addf %57, %56 : vector<2x128xf32>
      %59 = arith.divf %57, %58 : vector<2x128xf32>
      %60 = vector.extract_strided_slice %52 {offsets = [0, 128], sizes = [2, 128], strides = [1, 1]} : vector<2x512xf32> to vector<2x128xf32>
      %61 = arith.negf %60 : vector<2x128xf32>
      %62 = math.exp %61 : vector<2x128xf32>
      %cst_36 = arith.constant 1.000000e+00 : f32
      %63 = vector.broadcast %cst_36 : f32 to vector<2x128xf32>
      %64 = arith.addf %63, %62 : vector<2x128xf32>
      %65 = arith.divf %63, %64 : vector<2x128xf32>
      %66 = vector.extract_strided_slice %52 {offsets = [0, 256], sizes = [2, 128], strides = [1, 1]} : vector<2x512xf32> to vector<2x128xf32>
      %67 = math.tanh %66 : vector<2x128xf32>
      %68 = vector.extract_strided_slice %52 {offsets = [0, 384], sizes = [2, 128], strides = [1, 1]} : vector<2x512xf32> to vector<2x128xf32>
      %69 = arith.negf %68 : vector<2x128xf32>
      %70 = math.exp %69 : vector<2x128xf32>
      %cst_37 = arith.constant 1.000000e+00 : f32
      %71 = vector.broadcast %cst_37 : f32 to vector<2x128xf32>
      %72 = arith.addf %71, %70 : vector<2x128xf32>
      %73 = arith.divf %71, %72 : vector<2x128xf32>
      %74 = arith.mulf %65, %53 : vector<2x128xf32>
      %75 = arith.mulf %59, %67 : vector<2x128xf32>
      %76 = arith.addf %74, %75 : vector<2x128xf32>
      %77 = math.tanh %76 : vector<2x128xf32>
      %78 = arith.mulf %73, %77 : vector<2x128xf32>
      %c0_38 = arith.constant 0 : index
      %c0_39 = arith.constant 0 : index
      %79 = vector.load %arg7[%c0_38, %c0_39] : memref<2x128xf32, #tpu.memory_space<vmem>>, vector<2x128xf32>
      tpu.vector_store %arg7[%c0_38, %c0_39], %78 {strides = array<i32>} : memref<2x128xf32, #tpu.memory_space<vmem>>, vector<2x128xf32>,
      %c0_40 = arith.constant 0 : index
      %c0_41 = arith.constant 0 : index
      %80 = vector.load %arg8[%c0_40, %c0_41] : memref<2x128xf32, #tpu.memory_space<vmem>>, vector<2x128xf32>
      tpu.vector_store %arg8[%c0_40, %c0_41], %76 {strides = array<i32>} : memref<2x128xf32, #tpu.memory_space<vmem>>, vector<2x128xf32>,
    } else {
    }
    %c1_i32 = arith.constant 1 : i32
    %c8_i32_4 = arith.constant 8 : i32
    %8 = arith.muli %arg0, %c8_i32_4 : i32
    %9 = arith.addi %8, %c1_i32 : i32
    %c8_i32_5 = arith.constant 8 : i32
    %10 = arith.cmpi slt, %9, %c8_i32_5 : i32
    %11 = arith.extui %10 : i1 to i32
    %c0_i32_6 = arith.constant 0 : i32
    %12 = arith.cmpi ne, %11, %c0_i32_6 : i32
    scf.if %12 {
      %c0 = arith.constant 0 : index
      %c0_28 = arith.constant 0 : index
      %46 = vector.load %arg7[%c0, %c0_28] : memref<2x128xf32, #tpu.memory_space<vmem>>, vector<2x128xf32>
      %c0_29 = arith.constant 0 : index
      %c0_30 = arith.constant 0 : index
      %47 = vector.load %arg3[%c0_29, %c0_30] : memref<128x512xf32, #tpu.memory_space<vmem>>, vector<128x512xf32>
      %cst = arith.constant dense<0.000000e+00> : vector<2x512xf32>
      %48 = tpu.matmul %46, %47, %cst {dimension_numbers = #tpu.dot_dimension_numbers<[1], [0], [0], [1], [0, 0, 1, 1], [], []>} : vector<2x128xf32>, vector<128x512xf32>, vector<2x512xf32> -> vector<2x512xf32>
      %49 = arith.index_cast %c1_i32 : i32 to index
      %c0_31 = arith.constant 0 : index
      %c0_32 = arith.constant 0 : index
      %50 = vector.load %arg2[%49, %c0_31, %c0_32] : memref<8x2x512xf32, #tpu.memory_space<vmem>>, vector<1x2x512xf32>
      %51 = vector.shape_cast %50 : vector<1x2x512xf32> to vector<2x512xf32>
      %52 = arith.addf %48, %51 : vector<2x512xf32>
      %c0_33 = arith.constant 0 : index
      %c0_34 = arith.constant 0 : index
      %53 = vector.load %arg8[%c0_33, %c0_34] : memref<2x128xf32, #tpu.memory_space<vmem>>, vector<2x128xf32>
      %54 = vector.extract_strided_slice %52 {offsets = [0, 0], sizes = [2, 128], strides = [1, 1]} : vector<2x512xf32> to vector<2x128xf32>
      %55 = arith.negf %54 : vector<2x128xf32>
      %56 = math.exp %55 : vector<2x128xf32>
      %cst_35 = arith.constant 1.000000e+00 : f32
      %57 = vector.broadcast %cst_35 : f32 to vector<2x128xf32>
      %58 = arith.addf %57, %56 : vector<2x128xf32>
      %59 = arith.divf %57, %58 : vector<2x128xf32>
      %60 = vector.extract_strided_slice %52 {offsets = [0, 128], sizes = [2, 128], strides = [1, 1]} : vector<2x512xf32> to vector<2x128xf32>
      %61 = arith.negf %60 : vector<2x128xf32>
      %62 = math.exp %61 : vector<2x128xf32>
      %cst_36 = arith.constant 1.000000e+00 : f32
      %63 = vector.broadcast %cst_36 : f32 to vector<2x128xf32>
      %64 = arith.addf %63, %62 : vector<2x128xf32>
      %65 = arith.divf %63, %64 : vector<2x128xf32>
      %66 = vector.extract_strided_slice %52 {offsets = [0, 256], sizes = [2, 128], strides = [1, 1]} : vector<2x512xf32> to vector<2x128xf32>
      %67 = math.tanh %66 : vector<2x128xf32>
      %68 = vector.extract_strided_slice %52 {offsets = [0, 384], sizes = [2, 128], strides = [1, 1]} : vector<2x512xf32> to vector<2x128xf32>
      %69 = arith.negf %68 : vector<2x128xf32>
      %70 = math.exp %69 : vector<2x128xf32>
      %cst_37 = arith.constant 1.000000e+00 : f32
      %71 = vector.broadcast %cst_37 : f32 to vector<2x128xf32>
      %72 = arith.addf %71, %70 : vector<2x128xf32>
      %73 = arith.divf %71, %72 : vector<2x128xf32>
      %74 = arith.mulf %65, %53 : vector<2x128xf32>
      %75 = arith.mulf %59, %67 : vector<2x128xf32>
      %76 = arith.addf %74, %75 : vector<2x128xf32>
      %77 = math.tanh %76 : vector<2x128xf32>
      %78 = arith.mulf %73, %77 : vector<2x128xf32>
      %c0_38 = arith.constant 0 : index
      %c0_39 = arith.constant 0 : index
      %79 = vector.load %arg7[%c0_38, %c0_39] : memref<2x128xf32, #tpu.memory_space<vmem>>, vector<2x128xf32>
      tpu.vector_store %arg7[%c0_38, %c0_39], %78 {strides = array<i32>} : memref<2x128xf32, #tpu.memory_space<vmem>>, vector<2x128xf32>,
      %c0_40 = arith.constant 0 : index
      %c0_41 = arith.constant 0 : index
      %80 = vector.load %arg8[%c0_40, %c0_41] : memref<2x128xf32, #tpu.memory_space<vmem>>, vector<2x128xf32>
      tpu.vector_store %arg8[%c0_40, %c0_41], %76 {strides = array<i32>} : memref<2x128xf32, #tpu.memory_space<vmem>>, vector<2x128xf32>,
    } else {
    }
    %c2_i32 = arith.constant 2 : i32
    %c8_i32_7 = arith.constant 8 : i32
    %13 = arith.muli %arg0, %c8_i32_7 : i32
    %14 = arith.addi %13, %c2_i32 : i32
    %c8_i32_8 = arith.constant 8 : i32
    %15 = arith.cmpi slt, %14, %c8_i32_8 : i32
    %16 = arith.extui %15 : i1 to i32
    %c0_i32_9 = arith.constant 0 : i32
    %17 = arith.cmpi ne, %16, %c0_i32_9 : i32
    scf.if %17 {
      %c0 = arith.constant 0 : index
      %c0_28 = arith.constant 0 : index
      %46 = vector.load %arg7[%c0, %c0_28] : memref<2x128xf32, #tpu.memory_space<vmem>>, vector<2x128xf32>
      %c0_29 = arith.constant 0 : index
      %c0_30 = arith.constant 0 : index
      %47 = vector.load %arg3[%c0_29, %c0_30] : memref<128x512xf32, #tpu.memory_space<vmem>>, vector<128x512xf32>
      %cst = arith.constant dense<0.000000e+00> : vector<2x512xf32>
      %48 = tpu.matmul %46, %47, %cst {dimension_numbers = #tpu.dot_dimension_numbers<[1], [0], [0], [1], [0, 0, 1, 1], [], []>} : vector<2x128xf32>, vector<128x512xf32>, vector<2x512xf32> -> vector<2x512xf32>
      %49 = arith.index_cast %c2_i32 : i32 to index
      %c0_31 = arith.constant 0 : index
      %c0_32 = arith.constant 0 : index
      %50 = vector.load %arg2[%49, %c0_31, %c0_32] : memref<8x2x512xf32, #tpu.memory_space<vmem>>, vector<1x2x512xf32>
      %51 = vector.shape_cast %50 : vector<1x2x512xf32> to vector<2x512xf32>
      %52 = arith.addf %48, %51 : vector<2x512xf32>
      %c0_33 = arith.constant 0 : index
      %c0_34 = arith.constant 0 : index
      %53 = vector.load %arg8[%c0_33, %c0_34] : memref<2x128xf32, #tpu.memory_space<vmem>>, vector<2x128xf32>
      %54 = vector.extract_strided_slice %52 {offsets = [0, 0], sizes = [2, 128], strides = [1, 1]} : vector<2x512xf32> to vector<2x128xf32>
      %55 = arith.negf %54 : vector<2x128xf32>
      %56 = math.exp %55 : vector<2x128xf32>
      %cst_35 = arith.constant 1.000000e+00 : f32
      %57 = vector.broadcast %cst_35 : f32 to vector<2x128xf32>
      %58 = arith.addf %57, %56 : vector<2x128xf32>
      %59 = arith.divf %57, %58 : vector<2x128xf32>
      %60 = vector.extract_strided_slice %52 {offsets = [0, 128], sizes = [2, 128], strides = [1, 1]} : vector<2x512xf32> to vector<2x128xf32>
      %61 = arith.negf %60 : vector<2x128xf32>
      %62 = math.exp %61 : vector<2x128xf32>
      %cst_36 = arith.constant 1.000000e+00 : f32
      %63 = vector.broadcast %cst_36 : f32 to vector<2x128xf32>
      %64 = arith.addf %63, %62 : vector<2x128xf32>
      %65 = arith.divf %63, %64 : vector<2x128xf32>
      %66 = vector.extract_strided_slice %52 {offsets = [0, 256], sizes = [2, 128], strides = [1, 1]} : vector<2x512xf32> to vector<2x128xf32>
      %67 = math.tanh %66 : vector<2x128xf32>
      %68 = vector.extract_strided_slice %52 {offsets = [0, 384], sizes = [2, 128], strides = [1, 1]} : vector<2x512xf32> to vector<2x128xf32>
      %69 = arith.negf %68 : vector<2x128xf32>
      %70 = math.exp %69 : vector<2x128xf32>
      %cst_37 = arith.constant 1.000000e+00 : f32
      %71 = vector.broadcast %cst_37 : f32 to vector<2x128xf32>
      %72 = arith.addf %71, %70 : vector<2x128xf32>
      %73 = arith.divf %71, %72 : vector<2x128xf32>
      %74 = arith.mulf %65, %53 : vector<2x128xf32>
      %75 = arith.mulf %59, %67 : vector<2x128xf32>
      %76 = arith.addf %74, %75 : vector<2x128xf32>
      %77 = math.tanh %76 : vector<2x128xf32>
      %78 = arith.mulf %73, %77 : vector<2x128xf32>
      %c0_38 = arith.constant 0 : index
      %c0_39 = arith.constant 0 : index
      %79 = vector.load %arg7[%c0_38, %c0_39] : memref<2x128xf32, #tpu.memory_space<vmem>>, vector<2x128xf32>
      tpu.vector_store %arg7[%c0_38, %c0_39], %78 {strides = array<i32>} : memref<2x128xf32, #tpu.memory_space<vmem>>, vector<2x128xf32>,
      %c0_40 = arith.constant 0 : index
      %c0_41 = arith.constant 0 : index
      %80 = vector.load %arg8[%c0_40, %c0_41] : memref<2x128xf32, #tpu.memory_space<vmem>>, vector<2x128xf32>
      tpu.vector_store %arg8[%c0_40, %c0_41], %76 {strides = array<i32>} : memref<2x128xf32, #tpu.memory_space<vmem>>, vector<2x128xf32>,
    } else {
    }
    %c3_i32 = arith.constant 3 : i32
    %c8_i32_10 = arith.constant 8 : i32
    %18 = arith.muli %arg0, %c8_i32_10 : i32
    %19 = arith.addi %18, %c3_i32 : i32
    %c8_i32_11 = arith.constant 8 : i32
    %20 = arith.cmpi slt, %19, %c8_i32_11 : i32
    %21 = arith.extui %20 : i1 to i32
    %c0_i32_12 = arith.constant 0 : i32
    %22 = arith.cmpi ne, %21, %c0_i32_12 : i32
    scf.if %22 {
      %c0 = arith.constant 0 : index
      %c0_28 = arith.constant 0 : index
      %46 = vector.load %arg7[%c0, %c0_28] : memref<2x128xf32, #tpu.memory_space<vmem>>, vector<2x128xf32>
      %c0_29 = arith.constant 0 : index
      %c0_30 = arith.constant 0 : index
      %47 = vector.load %arg3[%c0_29, %c0_30] : memref<128x512xf32, #tpu.memory_space<vmem>>, vector<128x512xf32>
      %cst = arith.constant dense<0.000000e+00> : vector<2x512xf32>
      %48 = tpu.matmul %46, %47, %cst {dimension_numbers = #tpu.dot_dimension_numbers<[1], [0], [0], [1], [0, 0, 1, 1], [], []>} : vector<2x128xf32>, vector<128x512xf32>, vector<2x512xf32> -> vector<2x512xf32>
      %49 = arith.index_cast %c3_i32 : i32 to index
      %c0_31 = arith.constant 0 : index
      %c0_32 = arith.constant 0 : index
      %50 = vector.load %arg2[%49, %c0_31, %c0_32] : memref<8x2x512xf32, #tpu.memory_space<vmem>>, vector<1x2x512xf32>
      %51 = vector.shape_cast %50 : vector<1x2x512xf32> to vector<2x512xf32>
      %52 = arith.addf %48, %51 : vector<2x512xf32>
      %c0_33 = arith.constant 0 : index
      %c0_34 = arith.constant 0 : index
      %53 = vector.load %arg8[%c0_33, %c0_34] : memref<2x128xf32, #tpu.memory_space<vmem>>, vector<2x128xf32>
      %54 = vector.extract_strided_slice %52 {offsets = [0, 0], sizes = [2, 128], strides = [1, 1]} : vector<2x512xf32> to vector<2x128xf32>
      %55 = arith.negf %54 : vector<2x128xf32>
      %56 = math.exp %55 : vector<2x128xf32>
      %cst_35 = arith.constant 1.000000e+00 : f32
      %57 = vector.broadcast %cst_35 : f32 to vector<2x128xf32>
      %58 = arith.addf %57, %56 : vector<2x128xf32>
      %59 = arith.divf %57, %58 : vector<2x128xf32>
      %60 = vector.extract_strided_slice %52 {offsets = [0, 128], sizes = [2, 128], strides = [1, 1]} : vector<2x512xf32> to vector<2x128xf32>
      %61 = arith.negf %60 : vector<2x128xf32>
      %62 = math.exp %61 : vector<2x128xf32>
      %cst_36 = arith.constant 1.000000e+00 : f32
      %63 = vector.broadcast %cst_36 : f32 to vector<2x128xf32>
      %64 = arith.addf %63, %62 : vector<2x128xf32>
      %65 = arith.divf %63, %64 : vector<2x128xf32>
      %66 = vector.extract_strided_slice %52 {offsets = [0, 256], sizes = [2, 128], strides = [1, 1]} : vector<2x512xf32> to vector<2x128xf32>
      %67 = math.tanh %66 : vector<2x128xf32>
      %68 = vector.extract_strided_slice %52 {offsets = [0, 384], sizes = [2, 128], strides = [1, 1]} : vector<2x512xf32> to vector<2x128xf32>
      %69 = arith.negf %68 : vector<2x128xf32>
      %70 = math.exp %69 : vector<2x128xf32>
      %cst_37 = arith.constant 1.000000e+00 : f32
      %71 = vector.broadcast %cst_37 : f32 to vector<2x128xf32>
      %72 = arith.addf %71, %70 : vector<2x128xf32>
      %73 = arith.divf %71, %72 : vector<2x128xf32>
      %74 = arith.mulf %65, %53 : vector<2x128xf32>
      %75 = arith.mulf %59, %67 : vector<2x128xf32>
      %76 = arith.addf %74, %75 : vector<2x128xf32>
      %77 = math.tanh %76 : vector<2x128xf32>
      %78 = arith.mulf %73, %77 : vector<2x128xf32>
      %c0_38 = arith.constant 0 : index
      %c0_39 = arith.constant 0 : index
      %79 = vector.load %arg7[%c0_38, %c0_39] : memref<2x128xf32, #tpu.memory_space<vmem>>, vector<2x128xf32>
      tpu.vector_store %arg7[%c0_38, %c0_39], %78 {strides = array<i32>} : memref<2x128xf32, #tpu.memory_space<vmem>>, vector<2x128xf32>,
      %c0_40 = arith.constant 0 : index
      %c0_41 = arith.constant 0 : index
      %80 = vector.load %arg8[%c0_40, %c0_41] : memref<2x128xf32, #tpu.memory_space<vmem>>, vector<2x128xf32>
      tpu.vector_store %arg8[%c0_40, %c0_41], %76 {strides = array<i32>} : memref<2x128xf32, #tpu.memory_space<vmem>>, vector<2x128xf32>,
    } else {
    }
    %c4_i32 = arith.constant 4 : i32
    %c8_i32_13 = arith.constant 8 : i32
    %23 = arith.muli %arg0, %c8_i32_13 : i32
    %24 = arith.addi %23, %c4_i32 : i32
    %c8_i32_14 = arith.constant 8 : i32
    %25 = arith.cmpi slt, %24, %c8_i32_14 : i32
    %26 = arith.extui %25 : i1 to i32
    %c0_i32_15 = arith.constant 0 : i32
    %27 = arith.cmpi ne, %26, %c0_i32_15 : i32
    scf.if %27 {
      %c0 = arith.constant 0 : index
      %c0_28 = arith.constant 0 : index
      %46 = vector.load %arg7[%c0, %c0_28] : memref<2x128xf32, #tpu.memory_space<vmem>>, vector<2x128xf32>
      %c0_29 = arith.constant 0 : index
      %c0_30 = arith.constant 0 : index
      %47 = vector.load %arg3[%c0_29, %c0_30] : memref<128x512xf32, #tpu.memory_space<vmem>>, vector<128x512xf32>
      %cst = arith.constant dense<0.000000e+00> : vector<2x512xf32>
      %48 = tpu.matmul %46, %47, %cst {dimension_numbers = #tpu.dot_dimension_numbers<[1], [0], [0], [1], [0, 0, 1, 1], [], []>} : vector<2x128xf32>, vector<128x512xf32>, vector<2x512xf32> -> vector<2x512xf32>
      %49 = arith.index_cast %c4_i32 : i32 to index
      %c0_31 = arith.constant 0 : index
      %c0_32 = arith.constant 0 : index
      %50 = vector.load %arg2[%49, %c0_31, %c0_32] : memref<8x2x512xf32, #tpu.memory_space<vmem>>, vector<1x2x512xf32>
      %51 = vector.shape_cast %50 : vector<1x2x512xf32> to vector<2x512xf32>
      %52 = arith.addf %48, %51 : vector<2x512xf32>
      %c0_33 = arith.constant 0 : index
      %c0_34 = arith.constant 0 : index
      %53 = vector.load %arg8[%c0_33, %c0_34] : memref<2x128xf32, #tpu.memory_space<vmem>>, vector<2x128xf32>
      %54 = vector.extract_strided_slice %52 {offsets = [0, 0], sizes = [2, 128], strides = [1, 1]} : vector<2x512xf32> to vector<2x128xf32>
      %55 = arith.negf %54 : vector<2x128xf32>
      %56 = math.exp %55 : vector<2x128xf32>
      %cst_35 = arith.constant 1.000000e+00 : f32
      %57 = vector.broadcast %cst_35 : f32 to vector<2x128xf32>
      %58 = arith.addf %57, %56 : vector<2x128xf32>
      %59 = arith.divf %57, %58 : vector<2x128xf32>
      %60 = vector.extract_strided_slice %52 {offsets = [0, 128], sizes = [2, 128], strides = [1, 1]} : vector<2x512xf32> to vector<2x128xf32>
      %61 = arith.negf %60 : vector<2x128xf32>
      %62 = math.exp %61 : vector<2x128xf32>
      %cst_36 = arith.constant 1.000000e+00 : f32
      %63 = vector.broadcast %cst_36 : f32 to vector<2x128xf32>
      %64 = arith.addf %63, %62 : vector<2x128xf32>
      %65 = arith.divf %63, %64 : vector<2x128xf32>
      %66 = vector.extract_strided_slice %52 {offsets = [0, 256], sizes = [2, 128], strides = [1, 1]} : vector<2x512xf32> to vector<2x128xf32>
      %67 = math.tanh %66 : vector<2x128xf32>
      %68 = vector.extract_strided_slice %52 {offsets = [0, 384], sizes = [2, 128], strides = [1, 1]} : vector<2x512xf32> to vector<2x128xf32>
      %69 = arith.negf %68 : vector<2x128xf32>
      %70 = math.exp %69 : vector<2x128xf32>
      %cst_37 = arith.constant 1.000000e+00 : f32
      %71 = vector.broadcast %cst_37 : f32 to vector<2x128xf32>
      %72 = arith.addf %71, %70 : vector<2x128xf32>
      %73 = arith.divf %71, %72 : vector<2x128xf32>
      %74 = arith.mulf %65, %53 : vector<2x128xf32>
      %75 = arith.mulf %59, %67 : vector<2x128xf32>
      %76 = arith.addf %74, %75 : vector<2x128xf32>
      %77 = math.tanh %76 : vector<2x128xf32>
      %78 = arith.mulf %73, %77 : vector<2x128xf32>
      %c0_38 = arith.constant 0 : index
      %c0_39 = arith.constant 0 : index
      %79 = vector.load %arg7[%c0_38, %c0_39] : memref<2x128xf32, #tpu.memory_space<vmem>>, vector<2x128xf32>
      tpu.vector_store %arg7[%c0_38, %c0_39], %78 {strides = array<i32>} : memref<2x128xf32, #tpu.memory_space<vmem>>, vector<2x128xf32>,
      %c0_40 = arith.constant 0 : index
      %c0_41 = arith.constant 0 : index
      %80 = vector.load %arg8[%c0_40, %c0_41] : memref<2x128xf32, #tpu.memory_space<vmem>>, vector<2x128xf32>
      tpu.vector_store %arg8[%c0_40, %c0_41], %76 {strides = array<i32>} : memref<2x128xf32, #tpu.memory_space<vmem>>, vector<2x128xf32>,
    } else {
    }
    %c5_i32 = arith.constant 5 : i32
    %c8_i32_16 = arith.constant 8 : i32
    %28 = arith.muli %arg0, %c8_i32_16 : i32
    %29 = arith.addi %28, %c5_i32 : i32
    %c8_i32_17 = arith.constant 8 : i32
    %30 = arith.cmpi slt, %29, %c8_i32_17 : i32
    %31 = arith.extui %30 : i1 to i32
    %c0_i32_18 = arith.constant 0 : i32
    %32 = arith.cmpi ne, %31, %c0_i32_18 : i32
    scf.if %32 {
      %c0 = arith.constant 0 : index
      %c0_28 = arith.constant 0 : index
      %46 = vector.load %arg7[%c0, %c0_28] : memref<2x128xf32, #tpu.memory_space<vmem>>, vector<2x128xf32>
      %c0_29 = arith.constant 0 : index
      %c0_30 = arith.constant 0 : index
      %47 = vector.load %arg3[%c0_29, %c0_30] : memref<128x512xf32, #tpu.memory_space<vmem>>, vector<128x512xf32>
      %cst = arith.constant dense<0.000000e+00> : vector<2x512xf32>
      %48 = tpu.matmul %46, %47, %cst {dimension_numbers = #tpu.dot_dimension_numbers<[1], [0], [0], [1], [0, 0, 1, 1], [], []>} : vector<2x128xf32>, vector<128x512xf32>, vector<2x512xf32> -> vector<2x512xf32>
      %49 = arith.index_cast %c5_i32 : i32 to index
      %c0_31 = arith.constant 0 : index
      %c0_32 = arith.constant 0 : index
      %50 = vector.load %arg2[%49, %c0_31, %c0_32] : memref<8x2x512xf32, #tpu.memory_space<vmem>>, vector<1x2x512xf32>
      %51 = vector.shape_cast %50 : vector<1x2x512xf32> to vector<2x512xf32>
      %52 = arith.addf %48, %51 : vector<2x512xf32>
      %c0_33 = arith.constant 0 : index
      %c0_34 = arith.constant 0 : index
      %53 = vector.load %arg8[%c0_33, %c0_34] : memref<2x128xf32, #tpu.memory_space<vmem>>, vector<2x128xf32>
      %54 = vector.extract_strided_slice %52 {offsets = [0, 0], sizes = [2, 128], strides = [1, 1]} : vector<2x512xf32> to vector<2x128xf32>
      %55 = arith.negf %54 : vector<2x128xf32>
      %56 = math.exp %55 : vector<2x128xf32>
      %cst_35 = arith.constant 1.000000e+00 : f32
      %57 = vector.broadcast %cst_35 : f32 to vector<2x128xf32>
      %58 = arith.addf %57, %56 : vector<2x128xf32>
      %59 = arith.divf %57, %58 : vector<2x128xf32>
      %60 = vector.extract_strided_slice %52 {offsets = [0, 128], sizes = [2, 128], strides = [1, 1]} : vector<2x512xf32> to vector<2x128xf32>
      %61 = arith.negf %60 : vector<2x128xf32>
      %62 = math.exp %61 : vector<2x128xf32>
      %cst_36 = arith.constant 1.000000e+00 : f32
      %63 = vector.broadcast %cst_36 : f32 to vector<2x128xf32>
      %64 = arith.addf %63, %62 : vector<2x128xf32>
      %65 = arith.divf %63, %64 : vector<2x128xf32>
      %66 = vector.extract_strided_slice %52 {offsets = [0, 256], sizes = [2, 128], strides = [1, 1]} : vector<2x512xf32> to vector<2x128xf32>
      %67 = math.tanh %66 : vector<2x128xf32>
      %68 = vector.extract_strided_slice %52 {offsets = [0, 384], sizes = [2, 128], strides = [1, 1]} : vector<2x512xf32> to vector<2x128xf32>
      %69 = arith.negf %68 : vector<2x128xf32>
      %70 = math.exp %69 : vector<2x128xf32>
      %cst_37 = arith.constant 1.000000e+00 : f32
      %71 = vector.broadcast %cst_37 : f32 to vector<2x128xf32>
      %72 = arith.addf %71, %70 : vector<2x128xf32>
      %73 = arith.divf %71, %72 : vector<2x128xf32>
      %74 = arith.mulf %65, %53 : vector<2x128xf32>
      %75 = arith.mulf %59, %67 : vector<2x128xf32>
      %76 = arith.addf %74, %75 : vector<2x128xf32>
      %77 = math.tanh %76 : vector<2x128xf32>
      %78 = arith.mulf %73, %77 : vector<2x128xf32>
      %c0_38 = arith.constant 0 : index
      %c0_39 = arith.constant 0 : index
      %79 = vector.load %arg7[%c0_38, %c0_39] : memref<2x128xf32, #tpu.memory_space<vmem>>, vector<2x128xf32>
      tpu.vector_store %arg7[%c0_38, %c0_39], %78 {strides = array<i32>} : memref<2x128xf32, #tpu.memory_space<vmem>>, vector<2x128xf32>,
      %c0_40 = arith.constant 0 : index
      %c0_41 = arith.constant 0 : index
      %80 = vector.load %arg8[%c0_40, %c0_41] : memref<2x128xf32, #tpu.memory_space<vmem>>, vector<2x128xf32>
      tpu.vector_store %arg8[%c0_40, %c0_41], %76 {strides = array<i32>} : memref<2x128xf32, #tpu.memory_space<vmem>>, vector<2x128xf32>,
    } else {
    }
    %c6_i32 = arith.constant 6 : i32
    %c8_i32_19 = arith.constant 8 : i32
    %33 = arith.muli %arg0, %c8_i32_19 : i32
    %34 = arith.addi %33, %c6_i32 : i32
    %c8_i32_20 = arith.constant 8 : i32
    %35 = arith.cmpi slt, %34, %c8_i32_20 : i32
    %36 = arith.extui %35 : i1 to i32
    %c0_i32_21 = arith.constant 0 : i32
    %37 = arith.cmpi ne, %36, %c0_i32_21 : i32
    scf.if %37 {
      %c0 = arith.constant 0 : index
      %c0_28 = arith.constant 0 : index
      %46 = vector.load %arg7[%c0, %c0_28] : memref<2x128xf32, #tpu.memory_space<vmem>>, vector<2x128xf32>
      %c0_29 = arith.constant 0 : index
      %c0_30 = arith.constant 0 : index
      %47 = vector.load %arg3[%c0_29, %c0_30] : memref<128x512xf32, #tpu.memory_space<vmem>>, vector<128x512xf32>
      %cst = arith.constant dense<0.000000e+00> : vector<2x512xf32>
      %48 = tpu.matmul %46, %47, %cst {dimension_numbers = #tpu.dot_dimension_numbers<[1], [0], [0], [1], [0, 0, 1, 1], [], []>} : vector<2x128xf32>, vector<128x512xf32>, vector<2x512xf32> -> vector<2x512xf32>
      %49 = arith.index_cast %c6_i32 : i32 to index
      %c0_31 = arith.constant 0 : index
      %c0_32 = arith.constant 0 : index
      %50 = vector.load %arg2[%49, %c0_31, %c0_32] : memref<8x2x512xf32, #tpu.memory_space<vmem>>, vector<1x2x512xf32>
      %51 = vector.shape_cast %50 : vector<1x2x512xf32> to vector<2x512xf32>
      %52 = arith.addf %48, %51 : vector<2x512xf32>
      %c0_33 = arith.constant 0 : index
      %c0_34 = arith.constant 0 : index
      %53 = vector.load %arg8[%c0_33, %c0_34] : memref<2x128xf32, #tpu.memory_space<vmem>>, vector<2x128xf32>
      %54 = vector.extract_strided_slice %52 {offsets = [0, 0], sizes = [2, 128], strides = [1, 1]} : vector<2x512xf32> to vector<2x128xf32>
      %55 = arith.negf %54 : vector<2x128xf32>
      %56 = math.exp %55 : vector<2x128xf32>
      %cst_35 = arith.constant 1.000000e+00 : f32
      %57 = vector.broadcast %cst_35 : f32 to vector<2x128xf32>
      %58 = arith.addf %57, %56 : vector<2x128xf32>
      %59 = arith.divf %57, %58 : vector<2x128xf32>
      %60 = vector.extract_strided_slice %52 {offsets = [0, 128], sizes = [2, 128], strides = [1, 1]} : vector<2x512xf32> to vector<2x128xf32>
      %61 = arith.negf %60 : vector<2x128xf32>
      %62 = math.exp %61 : vector<2x128xf32>
      %cst_36 = arith.constant 1.000000e+00 : f32
      %63 = vector.broadcast %cst_36 : f32 to vector<2x128xf32>
      %64 = arith.addf %63, %62 : vector<2x128xf32>
      %65 = arith.divf %63, %64 : vector<2x128xf32>
      %66 = vector.extract_strided_slice %52 {offsets = [0, 256], sizes = [2, 128], strides = [1, 1]} : vector<2x512xf32> to vector<2x128xf32>
      %67 = math.tanh %66 : vector<2x128xf32>
      %68 = vector.extract_strided_slice %52 {offsets = [0, 384], sizes = [2, 128], strides = [1, 1]} : vector<2x512xf32> to vector<2x128xf32>
      %69 = arith.negf %68 : vector<2x128xf32>
      %70 = math.exp %69 : vector<2x128xf32>
      %cst_37 = arith.constant 1.000000e+00 : f32
      %71 = vector.broadcast %cst_37 : f32 to vector<2x128xf32>
      %72 = arith.addf %71, %70 : vector<2x128xf32>
      %73 = arith.divf %71, %72 : vector<2x128xf32>
      %74 = arith.mulf %65, %53 : vector<2x128xf32>
      %75 = arith.mulf %59, %67 : vector<2x128xf32>
      %76 = arith.addf %74, %75 : vector<2x128xf32>
      %77 = math.tanh %76 : vector<2x128xf32>
      %78 = arith.mulf %73, %77 : vector<2x128xf32>
      %c0_38 = arith.constant 0 : index
      %c0_39 = arith.constant 0 : index
      %79 = vector.load %arg7[%c0_38, %c0_39] : memref<2x128xf32, #tpu.memory_space<vmem>>, vector<2x128xf32>
      tpu.vector_store %arg7[%c0_38, %c0_39], %78 {strides = array<i32>} : memref<2x128xf32, #tpu.memory_space<vmem>>, vector<2x128xf32>,
      %c0_40 = arith.constant 0 : index
      %c0_41 = arith.constant 0 : index
      %80 = vector.load %arg8[%c0_40, %c0_41] : memref<2x128xf32, #tpu.memory_space<vmem>>, vector<2x128xf32>
      tpu.vector_store %arg8[%c0_40, %c0_41], %76 {strides = array<i32>} : memref<2x128xf32, #tpu.memory_space<vmem>>, vector<2x128xf32>,
    } else {
    }
    %c7_i32 = arith.constant 7 : i32
    %c8_i32_22 = arith.constant 8 : i32
    %38 = arith.muli %arg0, %c8_i32_22 : i32
    %39 = arith.addi %38, %c7_i32 : i32
    %c8_i32_23 = arith.constant 8 : i32
    %40 = arith.cmpi slt, %39, %c8_i32_23 : i32
    %41 = arith.extui %40 : i1 to i32
    %c0_i32_24 = arith.constant 0 : i32
    %42 = arith.cmpi ne, %41, %c0_i32_24 : i32
    scf.if %42 {
      %c0 = arith.constant 0 : index
      %c0_28 = arith.constant 0 : index
      %46 = vector.load %arg7[%c0, %c0_28] : memref<2x128xf32, #tpu.memory_space<vmem>>, vector<2x128xf32>
      %c0_29 = arith.constant 0 : index
      %c0_30 = arith.constant 0 : index
      %47 = vector.load %arg3[%c0_29, %c0_30] : memref<128x512xf32, #tpu.memory_space<vmem>>, vector<128x512xf32>
      %cst = arith.constant dense<0.000000e+00> : vector<2x512xf32>
      %48 = tpu.matmul %46, %47, %cst {dimension_numbers = #tpu.dot_dimension_numbers<[1], [0], [0], [1], [0, 0, 1, 1], [], []>} : vector<2x128xf32>, vector<128x512xf32>, vector<2x512xf32> -> vector<2x512xf32>
      %49 = arith.index_cast %c7_i32 : i32 to index
      %c0_31 = arith.constant 0 : index
      %c0_32 = arith.constant 0 : index
      %50 = vector.load %arg2[%49, %c0_31, %c0_32] : memref<8x2x512xf32, #tpu.memory_space<vmem>>, vector<1x2x512xf32>
      %51 = vector.shape_cast %50 : vector<1x2x512xf32> to vector<2x512xf32>
      %52 = arith.addf %48, %51 : vector<2x512xf32>
      %c0_33 = arith.constant 0 : index
      %c0_34 = arith.constant 0 : index
      %53 = vector.load %arg8[%c0_33, %c0_34] : memref<2x128xf32, #tpu.memory_space<vmem>>, vector<2x128xf32>
      %54 = vector.extract_strided_slice %52 {offsets = [0, 0], sizes = [2, 128], strides = [1, 1]} : vector<2x512xf32> to vector<2x128xf32>
      %55 = arith.negf %54 : vector<2x128xf32>
      %56 = math.exp %55 : vector<2x128xf32>
      %cst_35 = arith.constant 1.000000e+00 : f32
      %57 = vector.broadcast %cst_35 : f32 to vector<2x128xf32>
      %58 = arith.addf %57, %56 : vector<2x128xf32>
      %59 = arith.divf %57, %58 : vector<2x128xf32>
      %60 = vector.extract_strided_slice %52 {offsets = [0, 128], sizes = [2, 128], strides = [1, 1]} : vector<2x512xf32> to vector<2x128xf32>
      %61 = arith.negf %60 : vector<2x128xf32>
      %62 = math.exp %61 : vector<2x128xf32>
      %cst_36 = arith.constant 1.000000e+00 : f32
      %63 = vector.broadcast %cst_36 : f32 to vector<2x128xf32>
      %64 = arith.addf %63, %62 : vector<2x128xf32>
      %65 = arith.divf %63, %64 : vector<2x128xf32>
      %66 = vector.extract_strided_slice %52 {offsets = [0, 256], sizes = [2, 128], strides = [1, 1]} : vector<2x512xf32> to vector<2x128xf32>
      %67 = math.tanh %66 : vector<2x128xf32>
      %68 = vector.extract_strided_slice %52 {offsets = [0, 384], sizes = [2, 128], strides = [1, 1]} : vector<2x512xf32> to vector<2x128xf32>
      %69 = arith.negf %68 : vector<2x128xf32>
      %70 = math.exp %69 : vector<2x128xf32>
      %cst_37 = arith.constant 1.000000e+00 : f32
      %71 = vector.broadcast %cst_37 : f32 to vector<2x128xf32>
      %72 = arith.addf %71, %70 : vector<2x128xf32>
      %73 = arith.divf %71, %72 : vector<2x128xf32>
      %74 = arith.mulf %65, %53 : vector<2x128xf32>
      %75 = arith.mulf %59, %67 : vector<2x128xf32>
      %76 = arith.addf %74, %75 : vector<2x128xf32>
      %77 = math.tanh %76 : vector<2x128xf32>
      %78 = arith.mulf %73, %77 : vector<2x128xf32>
      %c0_38 = arith.constant 0 : index
      %c0_39 = arith.constant 0 : index
      %79 = vector.load %arg7[%c0_38, %c0_39] : memref<2x128xf32, #tpu.memory_space<vmem>>, vector<2x128xf32>
      tpu.vector_store %arg7[%c0_38, %c0_39], %78 {strides = array<i32>} : memref<2x128xf32, #tpu.memory_space<vmem>>, vector<2x128xf32>,
      %c0_40 = arith.constant 0 : index
      %c0_41 = arith.constant 0 : index
      %80 = vector.load %arg8[%c0_40, %c0_41] : memref<2x128xf32, #tpu.memory_space<vmem>>, vector<2x128xf32>
      tpu.vector_store %arg8[%c0_40, %c0_41], %76 {strides = array<i32>} : memref<2x128xf32, #tpu.memory_space<vmem>>, vector<2x128xf32>,
    } else {
    }
    %c8_i32_25 = arith.constant 8 : i32
    %c0_i32_26 = arith.constant 0 : i32
    %43 = arith.cmpi eq, %arg0, %c0_i32_26 : i32
    %44 = arith.extui %43 : i1 to i32
    %c0_i32_27 = arith.constant 0 : i32
    %45 = arith.cmpi ne, %44, %c0_i32_27 : i32
    scf.if %45 {
      %c0 = arith.constant 0 : index
      %c64 = arith.constant 64 : index
      %46 = vector.load %arg7[%c0, %c64] : memref<2x128xf32, #tpu.memory_space<vmem>>, vector<2x64xf32>
      %c0_28 = arith.constant 0 : index
      %c0_29 = arith.constant 0 : index
      %47 = vector.load %arg4[%c0_28, %c0_29] : memref<64x2xf32, #tpu.memory_space<vmem>>, vector<64x2xf32>
      %cst = arith.constant dense<0.000000e+00> : vector<2x2xf32>
      %48 = tpu.matmul %46, %47, %cst {dimension_numbers = #tpu.dot_dimension_numbers<[1], [0], [0], [1], [0, 0, 1, 1], [], []>} : vector<2x64xf32>, vector<64x2xf32>, vector<2x2xf32> -> vector<2x2xf32>
      %c0_30 = arith.constant 0 : index
      %c0_31 = arith.constant 0 : index
      %49 = vector.load %arg5[%c0_30, %c0_31] : memref<1x2xf32, #tpu.memory_space<vmem>>, vector<1x2xf32>
      %50 = vector.broadcast %49 : vector<1x2xf32> to vector<2x2xf32>
      %51 = arith.addf %48, %50 : vector<2x2xf32>
      %c0_32 = arith.constant 0 : index
      %c0_33 = arith.constant 0 : index
      %52 = vector.load %arg6[%c0_32, %c0_33] : memref<2x2xf32, #tpu.memory_space<vmem>>, vector<2x2xf32>
      tpu.vector_store %arg6[%c0_32, %c0_33], %51 {strides = array<i32>} : memref<2x2xf32, #tpu.memory_space<vmem>>, vector<2x2xf32>,
    } else {
    }
    return
  }
  func.func @transform_0(%arg0: i32) -> (i32, i32) {
    %c0_i32 = arith.constant 0 : i32
    %c0_i32_0 = arith.constant 0 : i32
    %c0_i32_1 = arith.constant 0 : i32
    return %c0_i32, %c0_i32_0 : i32, i32
  }
  func.func @transform_1(%arg0: i32) -> (i32, i32, i32) {
    %c0_i32 = arith.constant 0 : i32
    %c0_i32_0 = arith.constant 0 : i32
    %c0_i32_1 = arith.constant 0 : i32
    return %arg0, %c0_i32, %c0_i32_0 : i32, i32, i32
  }
  func.func @transform_2(%arg0: i32) -> (i32, i32) {
    %c0_i32 = arith.constant 0 : i32
    %c0_i32_0 = arith.constant 0 : i32
    %c0_i32_1 = arith.constant 0 : i32
    return %c0_i32, %c0_i32_0 : i32, i32
  }
  func.func @transform_3(%arg0: i32) -> (i32, i32) {
    %c0_i32 = arith.constant 0 : i32
    %c0_i32_0 = arith.constant 0 : i32
    %c0_i32_1 = arith.constant 0 : i32
    return %c0_i32, %c0_i32_0 : i32, i32
  }
  func.func @transform_4(%arg0: i32) -> (i32, i32) {
    %c0_i32 = arith.constant 0 : i32
    %c0_i32_0 = arith.constant 0 : i32
    %c0_i32_1 = arith.constant 0 : i32
    return %c0_i32, %c0_i32_0 : i32, i32
  }
  func.func @transform_5(%arg0: i32) -> (i32, i32) {
    %c0_i32 = arith.constant 0 : i32
    %c0_i32_0 = arith.constant 0 : i32
    %c0_i32_1 = arith.constant 0 : i32
    return %c0_i32, %c0_i32_0 : i32, i32
  }
}

</mosaic_0001>

<llo_original>
// kernel: tpu_custom_call.1
$region0: #{tpu_custom_call.1}
  #allocation0 [shape = 'u32[]', space=smem, size = 0x4, offset = 0x4, fixed_abs, tag = 'smem constant byte address 0x4 - core index']
  #allocation1 [shape = 'u32[72,128]{1,0:T(1,128)}', space=vmem, size = 0x9000, scoped, tag = 'internal scratch']
  #allocation2 [shape = 'f32[2,128]{1,0:T(2,128)}', space=vmem, size = 0x400, scoped, tag = 'scratch operand']
  #allocation3 [shape = 'f32[2,128]{1,0:T(2,128)}', space=vmem, size = 0x400, scoped, tag = 'scratch operand']
  %s0 = inlined_call_operand.hbm [shape: f32[2,512], index: 0, kind: input, shape index: {}]
  %s1 = inlined_call_operand.vmem [shape: f32[8,2,512], index: 1, kind: input, shape index: {}]
  %s2 = inlined_call_operand.hbm [shape: f32[128,512], index: 2, kind: input, shape index: {}]
  %s3 = inlined_call_operand.vmem [shape: f32[64,2], index: 3, kind: input, shape index: {}]
  %s4 = inlined_call_operand.vmem [shape: f32[1,2], index: 4, kind: input, shape index: {}]
  %s5 = inlined_call_operand.hbm [shape: f32[2,2], index: 5, kind: output, shape index: {}]
  %s6 = sld [smem:[#allocation0]]
  $region78: #{tpu_custom_call.1} parent=0
    _
  %s8 = ssub.s32 1, %s6
  %s9 = scalar_select 0, %s8, %s6
  $region1: #{tpu_custom_call.1} parent=0
    #allocation4 [shape = 'u8[4096]{0}', space=vmem, size = 0x1000, scoped, tag = 'input window, operand 0, single buffered']
    #allocation5 [shape = 's32[1]{0}', space=sflag, size = 0x4, scoped, tag = 'scoped memory for tpu_custom_call.1']
    #allocation6 [shape = 's32[1]{0}', space=sflag, size = 0x4, scoped, tag = 'scoped memory for tpu_custom_call.1']
    #allocation7 [shape = 'u8[262144]{0}', space=vmem, size = 0x40000, scoped, tag = 'input window, operand 2, single buffered']
    #allocation8 [shape = 's32[1]{0}', space=sflag, size = 0x4, scoped, tag = 'scoped memory for tpu_custom_call.1']
    #allocation9 [shape = 'u8[1024]{0}', space=vmem, size = 0x400, scoped, tag = 'output window, operand 0, single buffered']
    %10 = vsyncpa [#allocation5], 0
    %11 = vsyncpa [#allocation8], 0
    %12 = vsyncpa [#allocation6], 0
    // Predicated region
    $region2: #{tpu_custom_call.1} parent=1 // pred_check
      _
    $region3: #{tpu_custom_call.1} parent=1 // pred_check_branch
      %14 = sbr.rel (0) target = $region5
    $region4: #{tpu_custom_call.1} parent=1 // pred_region
      %16 = vsyncadd [#allocation5], 0
      %s18 = sshll.u32 %s0, 4
      %s19 = int_to_ptr.hbm [resolvable:$true] %s18
      %s20 = sshll.u32 [#allocation4], 4
      %s21 = int_to_ptr.vmem [resolvable:$true] %s20
      %23 = dma.hbm_to_vmem [thread:$0]  %s19, 128, %s21, [#allocation5]
    $region5: #{tpu_custom_call.1} parent=1 // pred_fallthru
      _
    // Predicated region
    $region6: #{tpu_custom_call.1} parent=1 // pred_check
      _
    $region7: #{tpu_custom_call.1} parent=1 // pred_check_branch
      %25 = sbr.rel (0) target = $region9
    $region8: #{tpu_custom_call.1} parent=1 // pred_region
      _
    $region9: #{tpu_custom_call.1} parent=1 // pred_fallthru
      _
    // Predicated region
    $region10: #{tpu_custom_call.1} parent=1 // pred_check
      _
    $region11: #{tpu_custom_call.1} parent=1 // pred_check_branch
      %27 = sbr.rel (0) target = $region13
    $region12: #{tpu_custom_call.1} parent=1 // pred_region
      %29 = vsyncadd [#allocation8], 0
      %s30 = sshll.u32 %s2, 4
      %s31 = int_to_ptr.hbm [resolvable:$true] %s30
      %s32 = sshll.u32 [#allocation7], 4
      %s33 = int_to_ptr.vmem [resolvable:$true] %s32
      %38 = dma.hbm_to_vmem [thread:$0]  %s31, 8192, %s33, [#allocation8], 512, 512, 32
    $region13: #{tpu_custom_call.1} parent=1 // pred_fallthru
      _
    // Predicated region
    $region14: #{tpu_custom_call.1} parent=1 // pred_check
      _
    $region15: #{tpu_custom_call.1} parent=1 // pred_check_branch
      %40 = sbr.rel (0) target = $region17
    $region16: #{tpu_custom_call.1} parent=1 // pred_region
      _
    $region17: #{tpu_custom_call.1} parent=1 // pred_fallthru
      _
    // Predicated region
    $region18: #{tpu_custom_call.1} parent=1 // pred_check
      _
    $region19: #{tpu_custom_call.1} parent=1 // pred_check_branch
      %42 = sbr.rel (0) target = $region21
    $region20: #{tpu_custom_call.1} parent=1 // pred_region
      _
    $region21: #{tpu_custom_call.1} parent=1 // pred_fallthru
      _
    // Predicated region
    $region22: #{tpu_custom_call.1} parent=1 // pred_check
      _
    $region23: #{tpu_custom_call.1} parent=1 // pred_check_branch
      %44 = sbr.rel (0) target = $region25
    $region24: #{tpu_custom_call.1} parent=1 // pred_region
      %46 = dma.done [#allocation5], 128
    $region25: #{tpu_custom_call.1} parent=1 // pred_fallthru
      _
    // Predicated region
    $region26: #{tpu_custom_call.1} parent=1 // pred_check
      _
    $region27: #{tpu_custom_call.1} parent=1 // pred_check_branch
      %48 = sbr.rel (0) target = $region29
    $region28: #{tpu_custom_call.1} parent=1 // pred_region
      %50 = dma.done [#allocation8], 8192
    $region29: #{tpu_custom_call.1} parent=1 // pred_fallthru
      _
    %p51 = scmp.eq.s32.totalorder 0, 0
    // Predicated region
    $region30: #{tpu_custom_call.1} parent=1 // pred_check
      %p52 = pneg %p51
    $region31: #{tpu_custom_call.1} parent=1 // pred_check_branch
      %54 = sbr.rel (%p52) target = $region33
    $region32: #{tpu_custom_call.1} parent=1 // pred_region
      %v55 = vld [vmem:[#allocation4] sm:$0xff]
      %v56 = vxor.u32 %v55, 2147483648
      %v57 = vmul.f32 %v56, 1.442695
      %v58 = vpow.pop %v57
      %v59 = vadd.f32 %v58, 1.0
      %v60 = vrcp.pop %v59
      %v61 = vmul.f32 %v59, %v60
      %v62 = vsub.f32 1.0, %v61
      %v63 = vmul.f32 %v60, %v62
      %v64 = vadd.f32 %v60, %v63
      %vm65 = vweird.f32 %v59
      %vm66 = vweird.f32 %v60
      %vm67 = vmor %vm65, %vm66
      %v68 = vsel %vm67, %v60, %v64
      %v69 = vand.u32 2147483647, %v59
      %vm70 = vcmp.eq.f32.partialorder %v69, 8.507059e+37
      %v71 = vand.u32 %v59, 2147483648
      %v72 = vor.u32 1.1754944e-38, %v71
      %v73 = vsel %vm70, %v72, %v68
      %v74 = vmul.f32 1.0, %v73
      %v76 = vrot.slane %v55, 2
      %v78 = vxor.u32 %v76, 2147483648
      %v79 = vmul.f32 %v78, 1.442695
      %v80 = vpow.pop %v79
      %v81 = vadd.f32 %v80, 1.0
      %v82 = vrcp.pop %v81
      %v83 = vmul.f32 %v81, %v82
      %v84 = vsub.f32 1.0, %v83
      %v85 = vmul.f32 %v82, %v84
      %v86 = vadd.f32 %v82, %v85
      %vm87 = vweird.f32 %v81
      %vm88 = vweird.f32 %v82
      %vm89 = vmor %vm87, %vm88
      %v90 = vsel %vm89, %v82, %v86
      %v91 = vand.u32 2147483647, %v81
      %vm92 = vcmp.eq.f32.partialorder %v91, 8.507059e+37
      %v93 = vand.u32 %v81, 2147483648
      %v94 = vor.u32 1.1754944e-38, %v93
      %v95 = vsel %vm92, %v94, %v90
      %v96 = vmul.f32 1.0, %v95
      %v97 = vrot.slane %v55, 4
      %v99 = vtanh.pop %v97
      %v100 = vrot.slane %v55, 6
      %v102 = vxor.u32 %v100, 2147483648
      %v103 = vmul.f32 %v102, 1.442695
      %v104 = vpow.pop %v103
      %v105 = vadd.f32 %v104, 1.0
      %v106 = vrcp.pop %v105
      %v107 = vmul.f32 %v105, %v106
      %v108 = vsub.f32 1.0, %v107
      %v109 = vmul.f32 %v106, %v108
      %v110 = vadd.f32 %v106, %v109
      %vm111 = vweird.f32 %v105
      %vm112 = vweird.f32 %v106
      %vm113 = vmor %vm111, %vm112
      %v114 = vsel %vm113, %v106, %v110
      %v115 = vand.u32 2147483647, %v105
      %vm116 = vcmp.eq.f32.partialorder %v115, 8.507059e+37
      %v117 = vand.u32 %v105, 2147483648
      %v118 = vor.u32 1.1754944e-38, %v117
      %v119 = vsel %vm116, %v118, %v114
      %v120 = vmul.f32 1.0, %v119
      %v121 = vmul.f32 %v96, 0.0
      %v122 = vmul.f32 %v74, %v99
      %v123 = vadd.f32 %v121, %v122
      %v124 = vtanh.pop %v123
      %v125 = vmul.f32 %v120, %v124
      %v126 = vlaneseq
      %v127 = vand.u32 %v126, 127
      %vm128 = vcmp.lt.s32.totalorder %v127, 64
      %v129 = vsel %vm128, %v125, 0.0
      %130 = vst [vmem:[#allocation2] sm:$0x3] %v129
      %v131 = vsel %vm128, %v123, 0.0
      %132 = vst [vmem:[#allocation3] sm:$0x3] %v131
    $region33: #{tpu_custom_call.1} parent=1 // pred_fallthru
      _
    %s133 = smul.u32 0, 8
    %p134 = scmp.lt.s32.totalorder %s133, 8
    // Predicated region
    $region34: #{tpu_custom_call.1} parent=1 // pred_check
      %p135 = pneg %p134
    $region35: #{tpu_custom_call.1} parent=1 // pred_check_branch
      %137 = sbr.rel (%p135) target = $region37
    $region36: #{tpu_custom_call.1} parent=1 // pred_region
      %v138 = vld [vmem:[#allocation2] sm:$0x3]
      %v139 = vld [vmem:[#allocation7] sm:$0xff]
      %v140 = vld [vmem:[#allocation7 + $0x8] sm:$0xff]
      %v141 = vld [vmem:[#allocation7 + $0x10] sm:$0xff]
      %v142 = vld [vmem:[#allocation7 + $0x18] sm:$0xff]
      %v143 = vld [vmem:[#allocation7 + $0x20] sm:$0xff]
      %v144 = vld [vmem:[#allocation7 + $0x28] sm:$0xff]
      %v145 = vld [vmem:[#allocation7 + $0x30] sm:$0xff]
      %v146 = vld [vmem:[#allocation7 + $0x38] sm:$0xff]
      %v147 = vld [vmem:[#allocation7 + $0x40] sm:$0xff]
      %v148 = vld [vmem:[#allocation7 + $0x48] sm:$0xff]
      %v149 = vld [vmem:[#allocation7 + $0x50] sm:$0xff]
      %v150 = vld [vmem:[#allocation7 + $0x58] sm:$0xff]
      %v151 = vld [vmem:[#allocation7 + $0x60] sm:$0xff]
      %v152 = vld [vmem:[#allocation7 + $0x68] sm:$0xff]
      %v153 = vld [vmem:[#allocation7 + $0x70] sm:$0xff]
      %v154 = vld [vmem:[#allocation7 + $0x78] sm:$0xff]
      %v155 = vld [vmem:[#allocation7 + $0x80] sm:$0xff]
      %v156 = vld [vmem:[#allocation7 + $0x88] sm:$0xff]
      %v157 = vld [vmem:[#allocation7 + $0x90] sm:$0xff]
      %v158 = vld [vmem:[#allocation7 + $0x98] sm:$0xff]
      %v159 = vld [vmem:[#allocation7 + $0xa0] sm:$0xff]
      %v160 = vld [vmem:[#allocation7 + $0xa8] sm:$0xff]
      %v161 = vld [vmem:[#allocation7 + $0xb0] sm:$0xff]
      %v162 = vld [vmem:[#allocation7 + $0xb8] sm:$0xff]
      %v163 = vld [vmem:[#allocation7 + $0xc0] sm:$0xff]
      %v164 = vld [vmem:[#allocation7 + $0xc8] sm:$0xff]
      %v165 = vld [vmem:[#allocation7 + $0xd0] sm:$0xff]
      %v166 = vld [vmem:[#allocation7 + $0xd8] sm:$0xff]
      %v167 = vld [vmem:[#allocation7 + $0xe0] sm:$0xff]
      %v168 = vld [vmem:[#allocation7 + $0xe8] sm:$0xff]
      %v169 = vld [vmem:[#allocation7 + $0xf0] sm:$0xff]
      %v170 = vld [vmem:[#allocation7 + $0xf8] sm:$0xff]
      %v171 = vld [vmem:[#allocation7 + $0x100] sm:$0xff]
      %v172 = vld [vmem:[#allocation7 + $0x108] sm:$0xff]
      %v173 = vld [vmem:[#allocation7 + $0x110] sm:$0xff]
      %v174 = vld [vmem:[#allocation7 + $0x118] sm:$0xff]
      %v175 = vld [vmem:[#allocation7 + $0x120] sm:$0xff]
      %v176 = vld [vmem:[#allocation7 + $0x128] sm:$0xff]
      %v177 = vld [vmem:[#allocation7 + $0x130] sm:$0xff]
      %v178 = vld [vmem:[#allocation7 + $0x138] sm:$0xff]
      %v179 = vld [vmem:[#allocation7 + $0x140] sm:$0xff]
      %v180 = vld [vmem:[#allocation7 + $0x148] sm:$0xff]
      %v181 = vld [vmem:[#allocation7 + $0x150] sm:$0xff]
      %v182 = vld [vmem:[#allocation7 + $0x158] sm:$0xff]
      %v183 = vld [vmem:[#allocation7 + $0x160] sm:$0xff]
      %v184 = vld [vmem:[#allocation7 + $0x168] sm:$0xff]
      %v185 = vld [vmem:[#allocation7 + $0x170] sm:$0xff]
      %v186 = vld [vmem:[#allocation7 + $0x178] sm:$0xff]
      %v187 = vld [vmem:[#allocation7 + $0x180] sm:$0xff]
      %v188 = vld [vmem:[#allocation7 + $0x188] sm:$0xff]
      %v189 = vld [vmem:[#allocation7 + $0x190] sm:$0xff]
      %v190 = vld [vmem:[#allocation7 + $0x198] sm:$0xff]
      %v191 = vld [vmem:[#allocation7 + $0x1a0] sm:$0xff]
      %v192 = vld [vmem:[#allocation7 + $0x1a8] sm:$0xff]
      %v193 = vld [vmem:[#allocation7 + $0x1b0] sm:$0xff]
      %v194 = vld [vmem:[#allocation7 + $0x1b8] sm:$0xff]
      %v195 = vld [vmem:[#allocation7 + $0x1c0] sm:$0xff]
      %v196 = vld [vmem:[#allocation7 + $0x1c8] sm:$0xff]
      %v197 = vld [vmem:[#allocation7 + $0x1d0] sm:$0xff]
      %v198 = vld [vmem:[#allocation7 + $0x1d8] sm:$0xff]
      %v199 = vld [vmem:[#allocation7 + $0x1e0] sm:$0xff]
      %v200 = vld [vmem:[#allocation7 + $0x1e8] sm:$0xff]
      %v201 = vld [vmem:[#allocation7 + $0x1f0] sm:$0xff]
      %v202 = vld [vmem:[#allocation7 + $0x1f8] sm:$0xff]
      %v203 = vld [vmem:[%s1] sm:$0xff]
      %205 = vst [vmem:[#allocation1] ss:$4 sm:$0xff] %v203
      %v206 = vld.sshfl [vmem:[#allocation1] sm:$0xff pattern:$0x73625140]
      %v207 = vld.sshfl [vmem:[#allocation1 + $0x8] sm:$0xff pattern:$0x73625140]
      %v208 = vld.sshfl [vmem:[#allocation1 + $0x10] sm:$0xff pattern:$0x73625140]
      %v209 = vld.sshfl [vmem:[#allocation1 + $0x18] sm:$0xff pattern:$0x73625140]
      %214 = vmatpush.msra.mxu0 %v199
      %215 = vmatpush.msra.mxu0 %v195
      %216 = vmatpush.msra.mxu0 %v191
      %217 = vmatpush.msra.mxu0 %v187
      %218 = vmatpush.msra.mxu0 %v183
      %219 = vmatpush.msra.mxu0 %v179
      %220 = vmatpush.msra.mxu0 %v175
      %221 = vmatpush.msra.mxu0 %v171
      %222 = vmatpush.msra.mxu0 %v167
      %223 = vmatpush.msra.mxu0 %v163
      %224 = vmatpush.msra.mxu0 %v159
      %225 = vmatpush.msra.mxu0 %v155
      %226 = vmatpush.msra.mxu0 %v151
      %227 = vmatpush.msra.mxu0 %v147
      %228 = vmatpush.msra.mxu0 %v143
      %229 = vmatpush.msra.mxu0 %v139
      %230 = vmatmul.f32.gmra.mxu0 %v138
      %v231 = vpop.f32.mrf.mxu0
      %v232 = vadd.f32 %v206, %v231
      %233 = vdwg.mxu0
      %234 = vmatpush.msra.mxu0 %v200
      %235 = vmatpush.msra.mxu0 %v196
      %236 = vmatpush.msra.mxu0 %v192
      %237 = vmatpush.msra.mxu0 %v188
      %238 = vmatpush.msra.mxu0 %v184
      %239 = vmatpush.msra.mxu0 %v180
      %240 = vmatpush.msra.mxu0 %v176
      %241 = vmatpush.msra.mxu0 %v172
      %242 = vmatpush.msra.mxu0 %v168
      %243 = vmatpush.msra.mxu0 %v164
      %244 = vmatpush.msra.mxu0 %v160
      %245 = vmatpush.msra.mxu0 %v156
      %246 = vmatpush.msra.mxu0 %v152
      %247 = vmatpush.msra.mxu0 %v148
      %248 = vmatpush.msra.mxu0 %v144
      %249 = vmatpush.msra.mxu0 %v140
      %250 = vmatmul.f32.gmra.mxu0 %v138
      %v251 = vpop.f32.mrf.mxu0
      %v252 = vadd.f32 %v207, %v251
      %253 = vdwg.mxu0
      %254 = vmatpush.msra.mxu0 %v201
      %255 = vmatpush.msra.mxu0 %v197
      %256 = vmatpush.msra.mxu0 %v193
      %257 = vmatpush.msra.mxu0 %v189
      %258 = vmatpush.msra.mxu0 %v185
      %259 = vmatpush.msra.mxu0 %v181
      %260 = vmatpush.msra.mxu0 %v177
      %261 = vmatpush.msra.mxu0 %v173
      %262 = vmatpush.msra.mxu0 %v169
      %263 = vmatpush.msra.mxu0 %v165
      %264 = vmatpush.msra.mxu0 %v161
      %265 = vmatpush.msra.mxu0 %v157
      %266 = vmatpush.msra.mxu0 %v153
      %267 = vmatpush.msra.mxu0 %v149
      %268 = vmatpush.msra.mxu0 %v145
      %269 = vmatpush.msra.mxu0 %v141
      %270 = vmatmul.f32.gmra.mxu0 %v138
      %v271 = vpop.f32.mrf.mxu0
      %v272 = vadd.f32 %v208, %v271
      %273 = vdwg.mxu0
      %274 = vmatpush.msra.mxu0 %v202
      %275 = vmatpush.msra.mxu0 %v198
      %276 = vmatpush.msra.mxu0 %v194
      %277 = vmatpush.msra.mxu0 %v190
      %278 = vmatpush.msra.mxu0 %v186
      %279 = vmatpush.msra.mxu0 %v182
      %280 = vmatpush.msra.mxu0 %v178
      %281 = vmatpush.msra.mxu0 %v174
      %282 = vmatpush.msra.mxu0 %v170
      %283 = vmatpush.msra.mxu0 %v166
      %284 = vmatpush.msra.mxu0 %v162
      %285 = vmatpush.msra.mxu0 %v158
      %286 = vmatpush.msra.mxu0 %v154
      %287 = vmatpush.msra.mxu0 %v150
      %288 = vmatpush.msra.mxu0 %v146
      %289 = vmatpush.msra.mxu0 %v142
      %290 = vmatmul.f32.gmra.mxu0 %v138
      %v291 = vpop.f32.mrf.mxu0
      %v292 = vadd.f32 %v209, %v291
      %293 = vdwg.mxu0
      %v294 = vld [vmem:[#allocation3] sm:$0x3]
      %v295 = vxor.u32 %v232, 2147483648
      %v296 = vmul.f32 %v295, 1.442695
      %v297 = vpow.pop %v296
      %v298 = vadd.f32 %v297, 1.0
      %v299 = vrcp.pop %v298
      %v300 = vmul.f32 %v298, %v299
      %v301 = vsub.f32 1.0, %v300
      %v302 = vmul.f32 %v299, %v301
      %v303 = vadd.f32 %v299, %v302
      %vm304 = vweird.f32 %v298
      %vm305 = vweird.f32 %v299
      %vm306 = vmor %vm304, %vm305
      %v307 = vsel %vm306, %v299, %v303
      %v308 = vand.u32 2147483647, %v298
      %vm309 = vcmp.eq.f32.partialorder %v308, 8.507059e+37
      %v310 = vand.u32 %v298, 2147483648
      %v311 = vor.u32 1.1754944e-38, %v310
      %v312 = vsel %vm309, %v311, %v307
      %v313 = vmul.f32 1.0, %v312
      %v314 = vxor.u32 %v252, 2147483648
      %v315 = vmul.f32 %v314, 1.442695
      %v316 = vpow.pop %v315
      %v317 = vadd.f32 %v316, 1.0
      %v318 = vrcp.pop %v317
      %v319 = vmul.f32 %v317, %v318
      %v320 = vsub.f32 1.0, %v319
      %v321 = vmul.f32 %v318, %v320
      %v322 = vadd.f32 %v318, %v321
      %vm323 = vweird.f32 %v317
      %vm324 = vweird.f32 %v318
      %vm325 = vmor %vm323, %vm324
      %v326 = vsel %vm325, %v318, %v322
      %v327 = vand.u32 2147483647, %v317
      %vm328 = vcmp.eq.f32.partialorder %v327, 8.507059e+37
      %v329 = vand.u32 %v317, 2147483648
      %v330 = vor.u32 1.1754944e-38, %v329
      %v331 = vsel %vm328, %v330, %v326
      %v332 = vmul.f32 1.0, %v331
      %v333 = vtanh.pop %v272
      %v334 = vxor.u32 %v292, 2147483648
      %v335 = vmul.f32 %v334, 1.442695
      %v336 = vpow.pop %v335
      %v337 = vadd.f32 %v336, 1.0
      %v338 = vrcp.pop %v337
      %v339 = vmul.f32 %v337, %v338
      %v340 = vsub.f32 1.0, %v339
      %v341 = vmul.f32 %v338, %v340
      %v342 = vadd.f32 %v338, %v341
      %vm343 = vweird.f32 %v337
      %vm344 = vweird.f32 %v338
      %vm345 = vmor %vm343, %vm344
      %v346 = vsel %vm345, %v338, %v342
      %v347 = vand.u32 2147483647, %v337
      %vm348 = vcmp.eq.f32.partialorder %v347, 8.507059e+37
      %v349 = vand.u32 %v337, 2147483648
      %v350 = vor.u32 1.1754944e-38, %v349
      %v351 = vsel %vm348, %v350, %v346
      %v352 = vmul.f32 1.0, %v351
      %v353 = vmul.f32 %v332, %v294
      %v354 = vmul.f32 %v313, %v333
      %v355 = vadd.f32 %v353, %v354
      %v356 = vtanh.pop %v355
      %v357 = vmul.f32 %v352, %v356
      %358 = vst [vmem:[#allocation2] sm:$0x3] %v357
      %359 = vst [vmem:[#allocation3] sm:$0x3] %v355
    $region37: #{tpu_custom_call.1} parent=1 // pred_fallthru
      _
    %s360 = sadd.s32 %s133, 1
    %p361 = scmp.lt.s32.totalorder %s360, 8
    // Predicated region
    $region38: #{tpu_custom_call.1} parent=1 // pred_check
      %p362 = pneg %p361
    $region39: #{tpu_custom_call.1} parent=1 // pred_check_branch
      %364 = sbr.rel (%p362) target = $region41
    $region40: #{tpu_custom_call.1} parent=1 // pred_region
      %v365 = vld [vmem:[#allocation2] sm:$0x3]
      %v366 = vld [vmem:[#allocation7] sm:$0xff]
      %v367 = vld [vmem:[#allocation7 + $0x8] sm:$0xff]
      %v368 = vld [vmem:[#allocation7 + $0x10] sm:$0xff]
      %v369 = vld [vmem:[#allocation7 + $0x18] sm:$0xff]
      %v370 = vld [vmem:[#allocation7 + $0x20] sm:$0xff]
      %v371 = vld [vmem:[#allocation7 + $0x28] sm:$0xff]
      %v372 = vld [vmem:[#allocation7 + $0x30] sm:$0xff]
      %v373 = vld [vmem:[#allocation7 + $0x38] sm:$0xff]
      %v374 = vld [vmem:[#allocation7 + $0x40] sm:$0xff]
      %v375 = vld [vmem:[#allocation7 + $0x48] sm:$0xff]
      %v376 = vld [vmem:[#allocation7 + $0x50] sm:$0xff]
      %v377 = vld [vmem:[#allocation7 + $0x58] sm:$0xff]
      %v378 = vld [vmem:[#allocation7 + $0x60] sm:$0xff]
      %v379 = vld [vmem:[#allocation7 + $0x68] sm:$0xff]
      %v380 = vld [vmem:[#allocation7 + $0x70] sm:$0xff]
      %v381 = vld [vmem:[#allocation7 + $0x78] sm:$0xff]
      %v382 = vld [vmem:[#allocation7 + $0x80] sm:$0xff]
      %v383 = vld [vmem:[#allocation7 + $0x88] sm:$0xff]
      %v384 = vld [vmem:[#allocation7 + $0x90] sm:$0xff]
      %v385 = vld [vmem:[#allocation7 + $0x98] sm:$0xff]
      %v386 = vld [vmem:[#allocation7 + $0xa0] sm:$0xff]
      %v387 = vld [vmem:[#allocation7 + $0xa8] sm:$0xff]
      %v388 = vld [vmem:[#allocation7 + $0xb0] sm:$0xff]
      %v389 = vld [vmem:[#allocation7 + $0xb8] sm:$0xff]
      %v390 = vld [vmem:[#allocation7 + $0xc0] sm:$0xff]
      %v391 = vld [vmem:[#allocation7 + $0xc8] sm:$0xff]
      %v392 = vld [vmem:[#allocation7 + $0xd0] sm:$0xff]
      %v393 = vld [vmem:[#allocation7 + $0xd8] sm:$0xff]
      %v394 = vld [vmem:[#allocation7 + $0xe0] sm:$0xff]
      %v395 = vld [vmem:[#allocation7 + $0xe8] sm:$0xff]
      %v396 = vld [vmem:[#allocation7 + $0xf0] sm:$0xff]
      %v397 = vld [vmem:[#allocation7 + $0xf8] sm:$0xff]
      %v398 = vld [vmem:[#allocation7 + $0x100] sm:$0xff]
      %v399 = vld [vmem:[#allocation7 + $0x108] sm:$0xff]
      %v400 = vld [vmem:[#allocation7 + $0x110] sm:$0xff]
      %v401 = vld [vmem:[#allocation7 + $0x118] sm:$0xff]
      %v402 = vld [vmem:[#allocation7 + $0x120] sm:$0xff]
      %v403 = vld [vmem:[#allocation7 + $0x128] sm:$0xff]
      %v404 = vld [vmem:[#allocation7 + $0x130] sm:$0xff]
      %v405 = vld [vmem:[#allocation7 + $0x138] sm:$0xff]
      %v406 = vld [vmem:[#allocation7 + $0x140] sm:$0xff]
      %v407 = vld [vmem:[#allocation7 + $0x148] sm:$0xff]
      %v408 = vld [vmem:[#allocation7 + $0x150] sm:$0xff]
      %v409 = vld [vmem:[#allocation7 + $0x158] sm:$0xff]
      %v410 = vld [vmem:[#allocation7 + $0x160] sm:$0xff]
      %v411 = vld [vmem:[#allocation7 + $0x168] sm:$0xff]
      %v412 = vld [vmem:[#allocation7 + $0x170] sm:$0xff]
      %v413 = vld [vmem:[#allocation7 + $0x178] sm:$0xff]
      %v414 = vld [vmem:[#allocation7 + $0x180] sm:$0xff]
      %v415 = vld [vmem:[#allocation7 + $0x188] sm:$0xff]
      %v416 = vld [vmem:[#allocation7 + $0x190] sm:$0xff]
      %v417 = vld [vmem:[#allocation7 + $0x198] sm:$0xff]
      %v418 = vld [vmem:[#allocation7 + $0x1a0] sm:$0xff]
      %v419 = vld [vmem:[#allocation7 + $0x1a8] sm:$0xff]
      %v420 = vld [vmem:[#allocation7 + $0x1b0] sm:$0xff]
      %v421 = vld [vmem:[#allocation7 + $0x1b8] sm:$0xff]
      %v422 = vld [vmem:[#allocation7 + $0x1c0] sm:$0xff]
      %v423 = vld [vmem:[#allocation7 + $0x1c8] sm:$0xff]
      %v424 = vld [vmem:[#allocation7 + $0x1d0] sm:$0xff]
      %v425 = vld [vmem:[#allocation7 + $0x1d8] sm:$0xff]
      %v426 = vld [vmem:[#allocation7 + $0x1e0] sm:$0xff]
      %v427 = vld [vmem:[#allocation7 + $0x1e8] sm:$0xff]
      %v428 = vld [vmem:[#allocation7 + $0x1f0] sm:$0xff]
      %v429 = vld [vmem:[#allocation7 + $0x1f8] sm:$0xff]
      %s430 = scalar_lea.vmem %s1, 8
      %v431 = vld [vmem:[%s430] sm:$0xff]
      %433 = vst [vmem:[#allocation1] ss:$4 sm:$0xff] %v431
      %v434 = vld.sshfl [vmem:[#allocation1] sm:$0xff pattern:$0x73625140]
      %v435 = vld.sshfl [vmem:[#allocation1 + $0x8] sm:$0xff pattern:$0x73625140]
      %v436 = vld.sshfl [vmem:[#allocation1 + $0x10] sm:$0xff pattern:$0x73625140]
      %v437 = vld.sshfl [vmem:[#allocation1 + $0x18] sm:$0xff pattern:$0x73625140]
      %442 = vmatpush.msra.mxu0 %v426
      %443 = vmatpush.msra.mxu0 %v422
      %444 = vmatpush.msra.mxu0 %v418
      %445 = vmatpush.msra.mxu0 %v414
      %446 = vmatpush.msra.mxu0 %v410
      %447 = vmatpush.msra.mxu0 %v406
      %448 = vmatpush.msra.mxu0 %v402
      %449 = vmatpush.msra.mxu0 %v398
      %450 = vmatpush.msra.mxu0 %v394
      %451 = vmatpush.msra.mxu0 %v390
      %452 = vmatpush.msra.mxu0 %v386
      %453 = vmatpush.msra.mxu0 %v382
      %454 = vmatpush.msra.mxu0 %v378
      %455 = vmatpush.msra.mxu0 %v374
      %456 = vmatpush.msra.mxu0 %v370
      %457 = vmatpush.msra.mxu0 %v366
      %458 = vmatmul.f32.gmra.mxu0 %v365
      %v459 = vpop.f32.mrf.mxu0
      %v460 = vadd.f32 %v434, %v459
      %461 = vdwg.mxu0
      %462 = vmatpush.msra.mxu0 %v427
      %463 = vmatpush.msra.mxu0 %v423
      %464 = vmatpush.msra.mxu0 %v419
      %465 = vmatpush.msra.mxu0 %v415
      %466 = vmatpush.msra.mxu0 %v411
      %467 = vmatpush.msra.mxu0 %v407
      %468 = vmatpush.msra.mxu0 %v403
      %469 = vmatpush.msra.mxu0 %v399
      %470 = vmatpush.msra.mxu0 %v395
      %471 = vmatpush.msra.mxu0 %v391
      %472 = vmatpush.msra.mxu0 %v387
      %473 = vmatpush.msra.mxu0 %v383
      %474 = vmatpush.msra.mxu0 %v379
      %475 = vmatpush.msra.mxu0 %v375
      %476 = vmatpush.msra.mxu0 %v371
      %477 = vmatpush.msra.mxu0 %v367
      %478 = vmatmul.f32.gmra.mxu0 %v365
      %v479 = vpop.f32.mrf.mxu0
      %v480 = vadd.f32 %v435, %v479
      %481 = vdwg.mxu0
      %482 = vmatpush.msra.mxu0 %v428
      %483 = vmatpush.msra.mxu0 %v424
      %484 = vmatpush.msra.mxu0 %v420
      %485 = vmatpush.msra.mxu0 %v416
      %486 = vmatpush.msra.mxu0 %v412
      %487 = vmatpush.msra.mxu0 %v408
      %488 = vmatpush.msra.mxu0 %v404
      %489 = vmatpush.msra.mxu0 %v400
      %490 = vmatpush.msra.mxu0 %v396
      %491 = vmatpush.msra.mxu0 %v392
      %492 = vmatpush.msra.mxu0 %v388
      %493 = vmatpush.msra.mxu0 %v384
      %494 = vmatpush.msra.mxu0 %v380
      %495 = vmatpush.msra.mxu0 %v376
      %496 = vmatpush.msra.mxu0 %v372
      %497 = vmatpush.msra.mxu0 %v368
      %498 = vmatmul.f32.gmra.mxu0 %v365
      %v499 = vpop.f32.mrf.mxu0
      %v500 = vadd.f32 %v436, %v499
      %501 = vdwg.mxu0
      %502 = vmatpush.msra.mxu0 %v429
      %503 = vmatpush.msra.mxu0 %v425
      %504 = vmatpush.msra.mxu0 %v421
      %505 = vmatpush.msra.mxu0 %v417
      %506 = vmatpush.msra.mxu0 %v413
      %507 = vmatpush.msra.mxu0 %v409
      %508 = vmatpush.msra.mxu0 %v405
      %509 = vmatpush.msra.mxu0 %v401
      %510 = vmatpush.msra.mxu0 %v397
      %511 = vmatpush.msra.mxu0 %v393
      %512 = vmatpush.msra.mxu0 %v389
      %513 = vmatpush.msra.mxu0 %v385
      %514 = vmatpush.msra.mxu0 %v381
      %515 = vmatpush.msra.mxu0 %v377
      %516 = vmatpush.msra.mxu0 %v373
      %517 = vmatpush.msra.mxu0 %v369
      %518 = vmatmul.f32.gmra.mxu0 %v365
      %v519 = vpop.f32.mrf.mxu0
      %v520 = vadd.f32 %v437, %v519
      %521 = vdwg.mxu0
      %v522 = vld [vmem:[#allocation3] sm:$0x3]
      %v523 = vxor.u32 %v460, 2147483648
      %v524 = vmul.f32 %v523, 1.442695
      %v525 = vpow.pop %v524
      %v526 = vadd.f32 %v525, 1.0
      %v527 = vrcp.pop %v526
      %v528 = vmul.f32 %v526, %v527
      %v529 = vsub.f32 1.0, %v528
      %v530 = vmul.f32 %v527, %v529
      %v531 = vadd.f32 %v527, %v530
      %vm532 = vweird.f32 %v526
      %vm533 = vweird.f32 %v527
      %vm534 = vmor %vm532, %vm533
      %v535 = vsel %vm534, %v527, %v531
      %v536 = vand.u32 2147483647, %v526
      %vm537 = vcmp.eq.f32.partialorder %v536, 8.507059e+37
      %v538 = vand.u32 %v526, 2147483648
      %v539 = vor.u32 1.1754944e-38, %v538
      %v540 = vsel %vm537, %v539, %v535
      %v541 = vmul.f32 1.0, %v540
      %v542 = vxor.u32 %v480, 2147483648
      %v543 = vmul.f32 %v542, 1.442695
      %v544 = vpow.pop %v543
      %v545 = vadd.f32 %v544, 1.0
      %v546 = vrcp.pop %v545
      %v547 = vmul.f32 %v545, %v546
      %v548 = vsub.f32 1.0, %v547
      %v549 = vmul.f32 %v546, %v548
      %v550 = vadd.f32 %v546, %v549
      %vm551 = vweird.f32 %v545
      %vm552 = vweird.f32 %v546
      %vm553 = vmor %vm551, %vm552
      %v554 = vsel %vm553, %v546, %v550
      %v555 = vand.u32 2147483647, %v545
      %vm556 = vcmp.eq.f32.partialorder %v555, 8.507059e+37
      %v557 = vand.u32 %v545, 2147483648
      %v558 = vor.u32 1.1754944e-38, %v557
      %v559 = vsel %vm556, %v558, %v554
      %v560 = vmul.f32 1.0, %v559
      %v561 = vtanh.pop %v500
      %v562 = vxor.u32 %v520, 2147483648
      %v563 = vmul.f32 %v562, 1.442695
      %v564 = vpow.pop %v563
      %v565 = vadd.f32 %v564, 1.0
      %v566 = vrcp.pop %v565
      %v567 = vmul.f32 %v565, %v566
      %v568 = vsub.f32 1.0, %v567
      %v569 = vmul.f32 %v566, %v568
      %v570 = vadd.f32 %v566, %v569
      %vm571 = vweird.f32 %v565
      %vm572 = vweird.f32 %v566
      %vm573 = vmor %vm571, %vm572
      %v574 = vsel %vm573, %v566, %v570
      %v575 = vand.u32 2147483647, %v565
      %vm576 = vcmp.eq.f32.partialorder %v575, 8.507059e+37
      %v577 = vand.u32 %v565, 2147483648
      %v578 = vor.u32 1.1754944e-38, %v577
      %v579 = vsel %vm576, %v578, %v574
      %v580 = vmul.f32 1.0, %v579
      %v581 = vmul.f32 %v560, %v522
      %v582 = vmul.f32 %v541, %v561
      %v583 = vadd.f32 %v581, %v582
      %v584 = vtanh.pop %v583
      %v585 = vmul.f32 %v580, %v584
      %586 = vst [vmem:[#allocation2] sm:$0x3] %v585
      %587 = vst [vmem:[#allocation3] sm:$0x3] %v583
    $region41: #{tpu_custom_call.1} parent=1 // pred_fallthru
      _
    %s588 = sadd.s32 %s133, 2
    %p589 = scmp.lt.s32.totalorder %s588, 8
    // Predicated region
    $region42: #{tpu_custom_call.1} parent=1 // pred_check
      %p590 = pneg %p589
    $region43: #{tpu_custom_call.1} parent=1 // pred_check_branch
      %592 = sbr.rel (%p590) target = $region45
    $region44: #{tpu_custom_call.1} parent=1 // pred_region
      %v593 = vld [vmem:[#allocation2] sm:$0x3]
      %v594 = vld [vmem:[#allocation7] sm:$0xff]
      %v595 = vld [vmem:[#allocation7 + $0x8] sm:$0xff]
      %v596 = vld [vmem:[#allocation7 + $0x10] sm:$0xff]
      %v597 = vld [vmem:[#allocation7 + $0x18] sm:$0xff]
      %v598 = vld [vmem:[#allocation7 + $0x20] sm:$0xff]
      %v599 = vld [vmem:[#allocation7 + $0x28] sm:$0xff]
      %v600 = vld [vmem:[#allocation7 + $0x30] sm:$0xff]
      %v601 = vld [vmem:[#allocation7 + $0x38] sm:$0xff]
      %v602 = vld [vmem:[#allocation7 + $0x40] sm:$0xff]
      %v603 = vld [vmem:[#allocation7 + $0x48] sm:$0xff]
      %v604 = vld [vmem:[#allocation7 + $0x50] sm:$0xff]
      %v605 = vld [vmem:[#allocation7 + $0x58] sm:$0xff]
      %v606 = vld [vmem:[#allocation7 + $0x60] sm:$0xff]
      %v607 = vld [vmem:[#allocation7 + $0x68] sm:$0xff]
      %v608 = vld [vmem:[#allocation7 + $0x70] sm:$0xff]
      %v609 = vld [vmem:[#allocation7 + $0x78] sm:$0xff]
      %v610 = vld [vmem:[#allocation7 + $0x80] sm:$0xff]
      %v611 = vld [vmem:[#allocation7 + $0x88] sm:$0xff]
      %v612 = vld [vmem:[#allocation7 + $0x90] sm:$0xff]
      %v613 = vld [vmem:[#allocation7 + $0x98] sm:$0xff]
      %v614 = vld [vmem:[#allocation7 + $0xa0] sm:$0xff]
      %v615 = vld [vmem:[#allocation7 + $0xa8] sm:$0xff]
      %v616 = vld [vmem:[#allocation7 + $0xb0] sm:$0xff]
      %v617 = vld [vmem:[#allocation7 + $0xb8] sm:$0xff]
      %v618 = vld [vmem:[#allocation7 + $0xc0] sm:$0xff]
      %v619 = vld [vmem:[#allocation7 + $0xc8] sm:$0xff]
      %v620 = vld [vmem:[#allocation7 + $0xd0] sm:$0xff]
      %v621 = vld [vmem:[#allocation7 + $0xd8] sm:$0xff]
      %v622 = vld [vmem:[#allocation7 + $0xe0] sm:$0xff]
      %v623 = vld [vmem:[#allocation7 + $0xe8] sm:$0xff]
      %v624 = vld [vmem:[#allocation7 + $0xf0] sm:$0xff]
      %v625 = vld [vmem:[#allocation7 + $0xf8] sm:$0xff]
      %v626 = vld [vmem:[#allocation7 + $0x100] sm:$0xff]
      %v627 = vld [vmem:[#allocation7 + $0x108] sm:$0xff]
      %v628 = vld [vmem:[#allocation7 + $0x110] sm:$0xff]
      %v629 = vld [vmem:[#allocation7 + $0x118] sm:$0xff]
      %v630 = vld [vmem:[#allocation7 + $0x120] sm:$0xff]
      %v631 = vld [vmem:[#allocation7 + $0x128] sm:$0xff]
      %v632 = vld [vmem:[#allocation7 + $0x130] sm:$0xff]
      %v633 = vld [vmem:[#allocation7 + $0x138] sm:$0xff]
      %v634 = vld [vmem:[#allocation7 + $0x140] sm:$0xff]
      %v635 = vld [vmem:[#allocation7 + $0x148] sm:$0xff]
      %v636 = vld [vmem:[#allocation7 + $0x150] sm:$0xff]
      %v637 = vld [vmem:[#allocation7 + $0x158] sm:$0xff]
      %v638 = vld [vmem:[#allocation7 + $0x160] sm:$0xff]
      %v639 = vld [vmem:[#allocation7 + $0x168] sm:$0xff]
      %v640 = vld [vmem:[#allocation7 + $0x170] sm:$0xff]
      %v641 = vld [vmem:[#allocation7 + $0x178] sm:$0xff]
      %v642 = vld [vmem:[#allocation7 + $0x180] sm:$0xff]
      %v643 = vld [vmem:[#allocation7 + $0x188] sm:$0xff]
      %v644 = vld [vmem:[#allocation7 + $0x190] sm:$0xff]
      %v645 = vld [vmem:[#allocation7 + $0x198] sm:$0xff]
      %v646 = vld [vmem:[#allocation7 + $0x1a0] sm:$0xff]
      %v647 = vld [vmem:[#allocation7 + $0x1a8] sm:$0xff]
      %v648 = vld [vmem:[#allocation7 + $0x1b0] sm:$0xff]
      %v649 = vld [vmem:[#allocation7 + $0x1b8] sm:$0xff]
      %v650 = vld [vmem:[#allocation7 + $0x1c0] sm:$0xff]
      %v651 = vld [vmem:[#allocation7 + $0x1c8] sm:$0xff]
      %v652 = vld [vmem:[#allocation7 + $0x1d0] sm:$0xff]
      %v653 = vld [vmem:[#allocation7 + $0x1d8] sm:$0xff]
      %v654 = vld [vmem:[#allocation7 + $0x1e0] sm:$0xff]
      %v655 = vld [vmem:[#allocation7 + $0x1e8] sm:$0xff]
      %v656 = vld [vmem:[#allocation7 + $0x1f0] sm:$0xff]
      %v657 = vld [vmem:[#allocation7 + $0x1f8] sm:$0xff]
      %s658 = scalar_lea.vmem %s1, 16
      %v659 = vld [vmem:[%s658] sm:$0xff]
      %661 = vst [vmem:[#allocation1] ss:$4 sm:$0xff] %v659
      %v662 = vld.sshfl [vmem:[#allocation1] sm:$0xff pattern:$0x73625140]
      %v663 = vld.sshfl [vmem:[#allocation1 + $0x8] sm:$0xff pattern:$0x73625140]
      %v664 = vld.sshfl [vmem:[#allocation1 + $0x10] sm:$0xff pattern:$0x73625140]
      %v665 = vld.sshfl [vmem:[#allocation1 + $0x18] sm:$0xff pattern:$0x73625140]
      %670 = vmatpush.msra.mxu0 %v654
      %671 = vmatpush.msra.mxu0 %v650
      %672 = vmatpush.msra.mxu0 %v646
      %673 = vmatpush.msra.mxu0 %v642
      %674 = vmatpush.msra.mxu0 %v638
      %675 = vmatpush.msra.mxu0 %v634
      %676 = vmatpush.msra.mxu0 %v630
      %677 = vmatpush.msra.mxu0 %v626
      %678 = vmatpush.msra.mxu0 %v622
      %679 = vmatpush.msra.mxu0 %v618
      %680 = vmatpush.msra.mxu0 %v614
      %681 = vmatpush.msra.mxu0 %v610
      %682 = vmatpush.msra.mxu0 %v606
      %683 = vmatpush.msra.mxu0 %v602
      %684 = vmatpush.msra.mxu0 %v598
      %685 = vmatpush.msra.mxu0 %v594
      %686 = vmatmul.f32.gmra.mxu0 %v593
      %v687 = vpop.f32.mrf.mxu0
      %v688 = vadd.f32 %v662, %v687
      %689 = vdwg.mxu0
      %690 = vmatpush.msra.mxu0 %v655
      %691 = vmatpush.msra.mxu0 %v651
      %692 = vmatpush.msra.mxu0 %v647
      %693 = vmatpush.msra.mxu0 %v643
      %694 = vmatpush.msra.mxu0 %v639
      %695 = vmatpush.msra.mxu0 %v635
      %696 = vmatpush.msra.mxu0 %v631
      %697 = vmatpush.msra.mxu0 %v627
      %698 = vmatpush.msra.mxu0 %v623
      %699 = vmatpush.msra.mxu0 %v619
      %700 = vmatpush.msra.mxu0 %v615
      %701 = vmatpush.msra.mxu0 %v611
      %702 = vmatpush.msra.mxu0 %v607
      %703 = vmatpush.msra.mxu0 %v603
      %704 = vmatpush.msra.mxu0 %v599
      %705 = vmatpush.msra.mxu0 %v595
      %706 = vmatmul.f32.gmra.mxu0 %v593
      %v707 = vpop.f32.mrf.mxu0
      %v708 = vadd.f32 %v663, %v707
      %709 = vdwg.mxu0
      %710 = vmatpush.msra.mxu0 %v656
      %711 = vmatpush.msra.mxu0 %v652
      %712 = vmatpush.msra.mxu0 %v648
      %713 = vmatpush.msra.mxu0 %v644
      %714 = vmatpush.msra.mxu0 %v640
      %715 = vmatpush.msra.mxu0 %v636
      %716 = vmatpush.msra.mxu0 %v632
      %717 = vmatpush.msra.mxu0 %v628
      %718 = vmatpush.msra.mxu0 %v624
      %719 = vmatpush.msra.mxu0 %v620
      %720 = vmatpush.msra.mxu0 %v616
      %721 = vmatpush.msra.mxu0 %v612
      %722 = vmatpush.msra.mxu0 %v608
      %723 = vmatpush.msra.mxu0 %v604
      %724 = vmatpush.msra.mxu0 %v600
      %725 = vmatpush.msra.mxu0 %v596
      %726 = vmatmul.f32.gmra.mxu0 %v593
      %v727 = vpop.f32.mrf.mxu0
      %v728 = vadd.f32 %v664, %v727
      %729 = vdwg.mxu0
      %730 = vmatpush.msra.mxu0 %v657
      %731 = vmatpush.msra.mxu0 %v653
      %732 = vmatpush.msra.mxu0 %v649
      %733 = vmatpush.msra.mxu0 %v645
      %734 = vmatpush.msra.mxu0 %v641
      %735 = vmatpush.msra.mxu0 %v637
      %736 = vmatpush.msra.mxu0 %v633
      %737 = vmatpush.msra.mxu0 %v629
      %738 = vmatpush.msra.mxu0 %v625
      %739 = vmatpush.msra.mxu0 %v621
      %740 = vmatpush.msra.mxu0 %v617
      %741 = vmatpush.msra.mxu0 %v613
      %742 = vmatpush.msra.mxu0 %v609
      %743 = vmatpush.msra.mxu0 %v605
      %744 = vmatpush.msra.mxu0 %v601
      %745 = vmatpush.msra.mxu0 %v597
      %746 = vmatmul.f32.gmra.mxu0 %v593
      %v747 = vpop.f32.mrf.mxu0
      %v748 = vadd.f32 %v665, %v747
      %749 = vdwg.mxu0
      %v750 = vld [vmem:[#allocation3] sm:$0x3]
      %v751 = vxor.u32 %v688, 2147483648
      %v752 = vmul.f32 %v751, 1.442695
      %v753 = vpow.pop %v752
      %v754 = vadd.f32 %v753, 1.0
      %v755 = vrcp.pop %v754
      %v756 = vmul.f32 %v754, %v755
      %v757 = vsub.f32 1.0, %v756
      %v758 = vmul.f32 %v755, %v757
      %v759 = vadd.f32 %v755, %v758
      %vm760 = vweird.f32 %v754
      %vm761 = vweird.f32 %v755
      %vm762 = vmor %vm760, %vm761
      %v763 = vsel %vm762, %v755, %v759
      %v764 = vand.u32 2147483647, %v754
      %vm765 = vcmp.eq.f32.partialorder %v764, 8.507059e+37
      %v766 = vand.u32 %v754, 2147483648
      %v767 = vor.u32 1.1754944e-38, %v766
      %v768 = vsel %vm765, %v767, %v763
      %v769 = vmul.f32 1.0, %v768
      %v770 = vxor.u32 %v708, 2147483648
      %v771 = vmul.f32 %v770, 1.442695
      %v772 = vpow.pop %v771
      %v773 = vadd.f32 %v772, 1.0
      %v774 = vrcp.pop %v773
      %v775 = vmul.f32 %v773, %v774
      %v776 = vsub.f32 1.0, %v775
      %v777 = vmul.f32 %v774, %v776
      %v778 = vadd.f32 %v774, %v777
      %vm779 = vweird.f32 %v773
      %vm780 = vweird.f32 %v774
      %vm781 = vmor %vm779, %vm780
      %v782 = vsel %vm781, %v774, %v778
      %v783 = vand.u32 2147483647, %v773
      %vm784 = vcmp.eq.f32.partialorder %v783, 8.507059e+37
      %v785 = vand.u32 %v773, 2147483648
      %v786 = vor.u32 1.1754944e-38, %v785
      %v787 = vsel %vm784, %v786, %v782
      %v788 = vmul.f32 1.0, %v787
      %v789 = vtanh.pop %v728
      %v790 = vxor.u32 %v748, 2147483648
      %v791 = vmul.f32 %v790, 1.442695
      %v792 = vpow.pop %v791
      %v793 = vadd.f32 %v792, 1.0
      %v794 = vrcp.pop %v793
      %v795 = vmul.f32 %v793, %v794
      %v796 = vsub.f32 1.0, %v795
      %v797 = vmul.f32 %v794, %v796
      %v798 = vadd.f32 %v794, %v797
      %vm799 = vweird.f32 %v793
      %vm800 = vweird.f32 %v794
      %vm801 = vmor %vm799, %vm800
      %v802 = vsel %vm801, %v794, %v798
      %v803 = vand.u32 2147483647, %v793
      %vm804 = vcmp.eq.f32.partialorder %v803, 8.507059e+37
      %v805 = vand.u32 %v793, 2147483648
      %v806 = vor.u32 1.1754944e-38, %v805
      %v807 = vsel %vm804, %v806, %v802
      %v808 = vmul.f32 1.0, %v807
      %v809 = vmul.f32 %v788, %v750
      %v810 = vmul.f32 %v769, %v789
      %v811 = vadd.f32 %v809, %v810
      %v812 = vtanh.pop %v811
      %v813 = vmul.f32 %v808, %v812
      %814 = vst [vmem:[#allocation2] sm:$0x3] %v813
      %815 = vst [vmem:[#allocation3] sm:$0x3] %v811
    $region45: #{tpu_custom_call.1} parent=1 // pred_fallthru
      _
    %s816 = sadd.s32 %s133, 3
    %p817 = scmp.lt.s32.totalorder %s816, 8
    // Predicated region
    $region46: #{tpu_custom_call.1} parent=1 // pred_check
      %p818 = pneg %p817
    $region47: #{tpu_custom_call.1} parent=1 // pred_check_branch
      %820 = sbr.rel (%p818) target = $region49
    $region48: #{tpu_custom_call.1} parent=1 // pred_region
      %v821 = vld [vmem:[#allocation2] sm:$0x3]
      %v822 = vld [vmem:[#allocation7] sm:$0xff]
      %v823 = vld [vmem:[#allocation7 + $0x8] sm:$0xff]
      %v824 = vld [vmem:[#allocation7 + $0x10] sm:$0xff]
      %v825 = vld [vmem:[#allocation7 + $0x18] sm:$0xff]
      %v826 = vld [vmem:[#allocation7 + $0x20] sm:$0xff]
      %v827 = vld [vmem:[#allocation7 + $0x28] sm:$0xff]
      %v828 = vld [vmem:[#allocation7 + $0x30] sm:$0xff]
      %v829 = vld [vmem:[#allocation7 + $0x38] sm:$0xff]
      %v830 = vld [vmem:[#allocation7 + $0x40] sm:$0xff]
      %v831 = vld [vmem:[#allocation7 + $0x48] sm:$0xff]
      %v832 = vld [vmem:[#allocation7 + $0x50] sm:$0xff]
      %v833 = vld [vmem:[#allocation7 + $0x58] sm:$0xff]
      %v834 = vld [vmem:[#allocation7 + $0x60] sm:$0xff]
      %v835 = vld [vmem:[#allocation7 + $0x68] sm:$0xff]
      %v836 = vld [vmem:[#allocation7 + $0x70] sm:$0xff]
      %v837 = vld [vmem:[#allocation7 + $0x78] sm:$0xff]
      %v838 = vld [vmem:[#allocation7 + $0x80] sm:$0xff]
      %v839 = vld [vmem:[#allocation7 + $0x88] sm:$0xff]
      %v840 = vld [vmem:[#allocation7 + $0x90] sm:$0xff]
      %v841 = vld [vmem:[#allocation7 + $0x98] sm:$0xff]
      %v842 = vld [vmem:[#allocation7 + $0xa0] sm:$0xff]
      %v843 = vld [vmem:[#allocation7 + $0xa8] sm:$0xff]
      %v844 = vld [vmem:[#allocation7 + $0xb0] sm:$0xff]
      %v845 = vld [vmem:[#allocation7 + $0xb8] sm:$0xff]
      %v846 = vld [vmem:[#allocation7 + $0xc0] sm:$0xff]
      %v847 = vld [vmem:[#allocation7 + $0xc8] sm:$0xff]
      %v848 = vld [vmem:[#allocation7 + $0xd0] sm:$0xff]
      %v849 = vld [vmem:[#allocation7 + $0xd8] sm:$0xff]
      %v850 = vld [vmem:[#allocation7 + $0xe0] sm:$0xff]
      %v851 = vld [vmem:[#allocation7 + $0xe8] sm:$0xff]
      %v852 = vld [vmem:[#allocation7 + $0xf0] sm:$0xff]
      %v853 = vld [vmem:[#allocation7 + $0xf8] sm:$0xff]
      %v854 = vld [vmem:[#allocation7 + $0x100] sm:$0xff]
      %v855 = vld [vmem:[#allocation7 + $0x108] sm:$0xff]
      %v856 = vld [vmem:[#allocation7 + $0x110] sm:$0xff]
      %v857 = vld [vmem:[#allocation7 + $0x118] sm:$0xff]
      %v858 = vld [vmem:[#allocation7 + $0x120] sm:$0xff]
      %v859 = vld [vmem:[#allocation7 + $0x128] sm:$0xff]
      %v860 = vld [vmem:[#allocation7 + $0x130] sm:$0xff]
      %v861 = vld [vmem:[#allocation7 + $0x138] sm:$0xff]
      %v862 = vld [vmem:[#allocation7 + $0x140] sm:$0xff]
      %v863 = vld [vmem:[#allocation7 + $0x148] sm:$0xff]
      %v864 = vld [vmem:[#allocation7 + $0x150] sm:$0xff]
      %v865 = vld [vmem:[#allocation7 + $0x158] sm:$0xff]
      %v866 = vld [vmem:[#allocation7 + $0x160] sm:$0xff]
      %v867 = vld [vmem:[#allocation7 + $0x168] sm:$0xff]
      %v868 = vld [vmem:[#allocation7 + $0x170] sm:$0xff]
      %v869 = vld [vmem:[#allocation7 + $0x178] sm:$0xff]
      %v870 = vld [vmem:[#allocation7 + $0x180] sm:$0xff]
      %v871 = vld [vmem:[#allocation7 + $0x188] sm:$0xff]
      %v872 = vld [vmem:[#allocation7 + $0x190] sm:$0xff]
      %v873 = vld [vmem:[#allocation7 + $0x198] sm:$0xff]
      %v874 = vld [vmem:[#allocation7 + $0x1a0] sm:$0xff]
      %v875 = vld [vmem:[#allocation7 + $0x1a8] sm:$0xff]
      %v876 = vld [vmem:[#allocation7 + $0x1b0] sm:$0xff]
      %v877 = vld [vmem:[#allocation7 + $0x1b8] sm:$0xff]
      %v878 = vld [vmem:[#allocation7 + $0x1c0] sm:$0xff]
      %v879 = vld [vmem:[#allocation7 + $0x1c8] sm:$0xff]
      %v880 = vld [vmem:[#allocation7 + $0x1d0] sm:$0xff]
      %v881 = vld [vmem:[#allocation7 + $0x1d8] sm:$0xff]
      %v882 = vld [vmem:[#allocation7 + $0x1e0] sm:$0xff]
      %v883 = vld [vmem:[#allocation7 + $0x1e8] sm:$0xff]
      %v884 = vld [vmem:[#allocation7 + $0x1f0] sm:$0xff]
      %v885 = vld [vmem:[#allocation7 + $0x1f8] sm:$0xff]
      %s886 = scalar_lea.vmem %s1, 24
      %v887 = vld [vmem:[%s886] sm:$0xff]
      %889 = vst [vmem:[#allocation1] ss:$4 sm:$0xff] %v887
      %v890 = vld.sshfl [vmem:[#allocation1] sm:$0xff pattern:$0x73625140]
      %v891 = vld.sshfl [vmem:[#allocation1 + $0x8] sm:$0xff pattern:$0x73625140]
      %v892 = vld.sshfl [vmem:[#allocation1 + $0x10] sm:$0xff pattern:$0x73625140]
      %v893 = vld.sshfl [vmem:[#allocation1 + $0x18] sm:$0xff pattern:$0x73625140]
      %898 = vmatpush.msra.mxu0 %v882
      %899 = vmatpush.msra.mxu0 %v878
      %900 = vmatpush.msra.mxu0 %v874
      %901 = vmatpush.msra.mxu0 %v870
      %902 = vmatpush.msra.mxu0 %v866
      %903 = vmatpush.msra.mxu0 %v862
      %904 = vmatpush.msra.mxu0 %v858
      %905 = vmatpush.msra.mxu0 %v854
      %906 = vmatpush.msra.mxu0 %v850
      %907 = vmatpush.msra.mxu0 %v846
      %908 = vmatpush.msra.mxu0 %v842
      %909 = vmatpush.msra.mxu0 %v838
      %910 = vmatpush.msra.mxu0 %v834
      %911 = vmatpush.msra.mxu0 %v830
      %912 = vmatpush.msra.mxu0 %v826
      %913 = vmatpush.msra.mxu0 %v822
      %914 = vmatmul.f32.gmra.mxu0 %v821
      %v915 = vpop.f32.mrf.mxu0
      %v916 = vadd.f32 %v890, %v915
      %917 = vdwg.mxu0
      %918 = vmatpush.msra.mxu0 %v883
      %919 = vmatpush.msra.mxu0 %v879
      %920 = vmatpush.msra.mxu0 %v875
      %921 = vmatpush.msra.mxu0 %v871
      %922 = vmatpush.msra.mxu0 %v867
      %923 = vmatpush.msra.mxu0 %v863
      %924 = vmatpush.msra.mxu0 %v859
      %925 = vmatpush.msra.mxu0 %v855
      %926 = vmatpush.msra.mxu0 %v851
      %927 = vmatpush.msra.mxu0 %v847
      %928 = vmatpush.msra.mxu0 %v843
      %929 = vmatpush.msra.mxu0 %v839
      %930 = vmatpush.msra.mxu0 %v835
      %931 = vmatpush.msra.mxu0 %v831
      %932 = vmatpush.msra.mxu0 %v827
      %933 = vmatpush.msra.mxu0 %v823
      %934 = vmatmul.f32.gmra.mxu0 %v821
      %v935 = vpop.f32.mrf.mxu0
      %v936 = vadd.f32 %v891, %v935
      %937 = vdwg.mxu0
      %938 = vmatpush.msra.mxu0 %v884
      %939 = vmatpush.msra.mxu0 %v880
      %940 = vmatpush.msra.mxu0 %v876
      %941 = vmatpush.msra.mxu0 %v872
      %942 = vmatpush.msra.mxu0 %v868
      %943 = vmatpush.msra.mxu0 %v864
      %944 = vmatpush.msra.mxu0 %v860
      %945 = vmatpush.msra.mxu0 %v856
      %946 = vmatpush.msra.mxu0 %v852
      %947 = vmatpush.msra.mxu0 %v848
      %948 = vmatpush.msra.mxu0 %v844
      %949 = vmatpush.msra.mxu0 %v840
      %950 = vmatpush.msra.mxu0 %v836
      %951 = vmatpush.msra.mxu0 %v832
      %952 = vmatpush.msra.mxu0 %v828
      %953 = vmatpush.msra.mxu0 %v824
      %954 = vmatmul.f32.gmra.mxu0 %v821
      %v955 = vpop.f32.mrf.mxu0
      %v956 = vadd.f32 %v892, %v955
      %957 = vdwg.mxu0
      %958 = vmatpush.msra.mxu0 %v885
      %959 = vmatpush.msra.mxu0 %v881
      %960 = vmatpush.msra.mxu0 %v877
      %961 = vmatpush.msra.mxu0 %v873
      %962 = vmatpush.msra.mxu0 %v869
      %963 = vmatpush.msra.mxu0 %v865
      %964 = vmatpush.msra.mxu0 %v861
      %965 = vmatpush.msra.mxu0 %v857
      %966 = vmatpush.msra.mxu0 %v853
      %967 = vmatpush.msra.mxu0 %v849
      %968 = vmatpush.msra.mxu0 %v845
      %969 = vmatpush.msra.mxu0 %v841
      %970 = vmatpush.msra.mxu0 %v837
      %971 = vmatpush.msra.mxu0 %v833
      %972 = vmatpush.msra.mxu0 %v829
      %973 = vmatpush.msra.mxu0 %v825
      %974 = vmatmul.f32.gmra.mxu0 %v821
      %v975 = vpop.f32.mrf.mxu0
      %v976 = vadd.f32 %v893, %v975
      %977 = vdwg.mxu0
      %v978 = vld [vmem:[#allocation3] sm:$0x3]
      %v979 = vxor.u32 %v916, 2147483648
      %v980 = vmul.f32 %v979, 1.442695
      %v981 = vpow.pop %v980
      %v982 = vadd.f32 %v981, 1.0
      %v983 = vrcp.pop %v982
      %v984 = vmul.f32 %v982, %v983
      %v985 = vsub.f32 1.0, %v984
      %v986 = vmul.f32 %v983, %v985
      %v987 = vadd.f32 %v983, %v986
      %vm988 = vweird.f32 %v982
      %vm989 = vweird.f32 %v983
      %vm990 = vmor %vm988, %vm989
      %v991 = vsel %vm990, %v983, %v987
      %v992 = vand.u32 2147483647, %v982
      %vm993 = vcmp.eq.f32.partialorder %v992, 8.507059e+37
      %v994 = vand.u32 %v982, 2147483648
      %v995 = vor.u32 1.1754944e-38, %v994
      %v996 = vsel %vm993, %v995, %v991
      %v997 = vmul.f32 1.0, %v996
      %v998 = vxor.u32 %v936, 2147483648
      %v999 = vmul.f32 %v998, 1.442695
      %v1000 = vpow.pop %v999
      %v1001 = vadd.f32 %v1000, 1.0
      %v1002 = vrcp.pop %v1001
      %v1003 = vmul.f32 %v1001, %v1002
      %v1004 = vsub.f32 1.0, %v1003
      %v1005 = vmul.f32 %v1002, %v1004
      %v1006 = vadd.f32 %v1002, %v1005
      %vm1007 = vweird.f32 %v1001
      %vm1008 = vweird.f32 %v1002
      %vm1009 = vmor %vm1007, %vm1008
      %v1010 = vsel %vm1009, %v1002, %v1006
      %v1011 = vand.u32 2147483647, %v1001
      %vm1012 = vcmp.eq.f32.partialorder %v1011, 8.507059e+37
      %v1013 = vand.u32 %v1001, 2147483648
      %v1014 = vor.u32 1.1754944e-38, %v1013
      %v1015 = vsel %vm1012, %v1014, %v1010
      %v1016 = vmul.f32 1.0, %v1015
      %v1017 = vtanh.pop %v956
      %v1018 = vxor.u32 %v976, 2147483648
      %v1019 = vmul.f32 %v1018, 1.442695
      %v1020 = vpow.pop %v1019
      %v1021 = vadd.f32 %v1020, 1.0
      %v1022 = vrcp.pop %v1021
      %v1023 = vmul.f32 %v1021, %v1022
      %v1024 = vsub.f32 1.0, %v1023
      %v1025 = vmul.f32 %v1022, %v1024
      %v1026 = vadd.f32 %v1022, %v1025
      %vm1027 = vweird.f32 %v1021
      %vm1028 = vweird.f32 %v1022
      %vm1029 = vmor %vm1027, %vm1028
      %v1030 = vsel %vm1029, %v1022, %v1026
      %v1031 = vand.u32 2147483647, %v1021
      %vm1032 = vcmp.eq.f32.partialorder %v1031, 8.507059e+37
      %v1033 = vand.u32 %v1021, 2147483648
      %v1034 = vor.u32 1.1754944e-38, %v1033
      %v1035 = vsel %vm1032, %v1034, %v1030
      %v1036 = vmul.f32 1.0, %v1035
      %v1037 = vmul.f32 %v1016, %v978
      %v1038 = vmul.f32 %v997, %v1017
      %v1039 = vadd.f32 %v1037, %v1038
      %v1040 = vtanh.pop %v1039
      %v1041 = vmul.f32 %v1036, %v1040
      %1042 = vst [vmem:[#allocation2] sm:$0x3] %v1041
      %1043 = vst [vmem:[#allocation3] sm:$0x3] %v1039
    $region49: #{tpu_custom_call.1} parent=1 // pred_fallthru
      _
    %s1044 = sadd.s32 %s133, 4
    %p1045 = scmp.lt.s32.totalorder %s1044, 8
    // Predicated region
    $region50: #{tpu_custom_call.1} parent=1 // pred_check
      %p1046 = pneg %p1045
    $region51: #{tpu_custom_call.1} parent=1 // pred_check_branch
      %1048 = sbr.rel (%p1046) target = $region53
    $region52: #{tpu_custom_call.1} parent=1 // pred_region
      %v1049 = vld [vmem:[#allocation2] sm:$0x3]
      %v1050 = vld [vmem:[#allocation7] sm:$0xff]
      %v1051 = vld [vmem:[#allocation7 + $0x8] sm:$0xff]
      %v1052 = vld [vmem:[#allocation7 + $0x10] sm:$0xff]
      %v1053 = vld [vmem:[#allocation7 + $0x18] sm:$0xff]
      %v1054 = vld [vmem:[#allocation7 + $0x20] sm:$0xff]
      %v1055 = vld [vmem:[#allocation7 + $0x28] sm:$0xff]
      %v1056 = vld [vmem:[#allocation7 + $0x30] sm:$0xff]
      %v1057 = vld [vmem:[#allocation7 + $0x38] sm:$0xff]
      %v1058 = vld [vmem:[#allocation7 + $0x40] sm:$0xff]
      %v1059 = vld [vmem:[#allocation7 + $0x48] sm:$0xff]
      %v1060 = vld [vmem:[#allocation7 + $0x50] sm:$0xff]
      %v1061 = vld [vmem:[#allocation7 + $0x58] sm:$0xff]
      %v1062 = vld [vmem:[#allocation7 + $0x60] sm:$0xff]
      %v1063 = vld [vmem:[#allocation7 + $0x68] sm:$0xff]
      %v1064 = vld [vmem:[#allocation7 + $0x70] sm:$0xff]
      %v1065 = vld [vmem:[#allocation7 + $0x78] sm:$0xff]
      %v1066 = vld [vmem:[#allocation7 + $0x80] sm:$0xff]
      %v1067 = vld [vmem:[#allocation7 + $0x88] sm:$0xff]
      %v1068 = vld [vmem:[#allocation7 + $0x90] sm:$0xff]
      %v1069 = vld [vmem:[#allocation7 + $0x98] sm:$0xff]
      %v1070 = vld [vmem:[#allocation7 + $0xa0] sm:$0xff]
      %v1071 = vld [vmem:[#allocation7 + $0xa8] sm:$0xff]
      %v1072 = vld [vmem:[#allocation7 + $0xb0] sm:$0xff]
      %v1073 = vld [vmem:[#allocation7 + $0xb8] sm:$0xff]
      %v1074 = vld [vmem:[#allocation7 + $0xc0] sm:$0xff]
      %v1075 = vld [vmem:[#allocation7 + $0xc8] sm:$0xff]
      %v1076 = vld [vmem:[#allocation7 + $0xd0] sm:$0xff]
      %v1077 = vld [vmem:[#allocation7 + $0xd8] sm:$0xff]
      %v1078 = vld [vmem:[#allocation7 + $0xe0] sm:$0xff]
      %v1079 = vld [vmem:[#allocation7 + $0xe8] sm:$0xff]
      %v1080 = vld [vmem:[#allocation7 + $0xf0] sm:$0xff]
      %v1081 = vld [vmem:[#allocation7 + $0xf8] sm:$0xff]
      %v1082 = vld [vmem:[#allocation7 + $0x100] sm:$0xff]
      %v1083 = vld [vmem:[#allocation7 + $0x108] sm:$0xff]
      %v1084 = vld [vmem:[#allocation7 + $0x110] sm:$0xff]
      %v1085 = vld [vmem:[#allocation7 + $0x118] sm:$0xff]
      %v1086 = vld [vmem:[#allocation7 + $0x120] sm:$0xff]
      %v1087 = vld [vmem:[#allocation7 + $0x128] sm:$0xff]
      %v1088 = vld [vmem:[#allocation7 + $0x130] sm:$0xff]
      %v1089 = vld [vmem:[#allocation7 + $0x138] sm:$0xff]
      %v1090 = vld [vmem:[#allocation7 + $0x140] sm:$0xff]
      %v1091 = vld [vmem:[#allocation7 + $0x148] sm:$0xff]
      %v1092 = vld [vmem:[#allocation7 + $0x150] sm:$0xff]
      %v1093 = vld [vmem:[#allocation7 + $0x158] sm:$0xff]
      %v1094 = vld [vmem:[#allocation7 + $0x160] sm:$0xff]
      %v1095 = vld [vmem:[#allocation7 + $0x168] sm:$0xff]
      %v1096 = vld [vmem:[#allocation7 + $0x170] sm:$0xff]
      %v1097 = vld [vmem:[#allocation7 + $0x178] sm:$0xff]
      %v1098 = vld [vmem:[#allocation7 + $0x180] sm:$0xff]
      %v1099 = vld [vmem:[#allocation7 + $0x188] sm:$0xff]
      %v1100 = vld [vmem:[#allocation7 + $0x190] sm:$0xff]
      %v1101 = vld [vmem:[#allocation7 + $0x198] sm:$0xff]
      %v1102 = vld [vmem:[#allocation7 + $0x1a0] sm:$0xff]
      %v1103 = vld [vmem:[#allocation7 + $0x1a8] sm:$0xff]
      %v1104 = vld [vmem:[#allocation7 + $0x1b0] sm:$0xff]
      %v1105 = vld [vmem:[#allocation7 + $0x1b8] sm:$0xff]
      %v1106 = vld [vmem:[#allocation7 + $0x1c0] sm:$0xff]
      %v1107 = vld [vmem:[#allocation7 + $0x1c8] sm:$0xff]
      %v1108 = vld [vmem:[#allocation7 + $0x1d0] sm:$0xff]
      %v1109 = vld [vmem:[#allocation7 + $0x1d8] sm:$0xff]
      %v1110 = vld [vmem:[#allocation7 + $0x1e0] sm:$0xff]
      %v1111 = vld [vmem:[#allocation7 + $0x1e8] sm:$0xff]
      %v1112 = vld [vmem:[#allocation7 + $0x1f0] sm:$0xff]
      %v1113 = vld [vmem:[#allocation7 + $0x1f8] sm:$0xff]
      %s1114 = scalar_lea.vmem %s1, 32
      %v1115 = vld [vmem:[%s1114] sm:$0xff]
      %1117 = vst [vmem:[#allocation1] ss:$4 sm:$0xff] %v1115
      %v1118 = vld.sshfl [vmem:[#allocation1] sm:$0xff pattern:$0x73625140]
      %v1119 = vld.sshfl [vmem:[#allocation1 + $0x8] sm:$0xff pattern:$0x73625140]
      %v1120 = vld.sshfl [vmem:[#allocation1 + $0x10] sm:$0xff pattern:$0x73625140]
      %v1121 = vld.sshfl [vmem:[#allocation1 + $0x18] sm:$0xff pattern:$0x73625140]
      %1126 = vmatpush.msra.mxu0 %v1110
      %1127 = vmatpush.msra.mxu0 %v1106
      %1128 = vmatpush.msra.mxu0 %v1102
      %1129 = vmatpush.msra.mxu0 %v1098
      %1130 = vmatpush.msra.mxu0 %v1094
      %1131 = vmatpush.msra.mxu0 %v1090
      %1132 = vmatpush.msra.mxu0 %v1086
      %1133 = vmatpush.msra.mxu0 %v1082
      %1134 = vmatpush.msra.mxu0 %v1078
      %1135 = vmatpush.msra.mxu0 %v1074
      %1136 = vmatpush.msra.mxu0 %v1070
      %1137 = vmatpush.msra.mxu0 %v1066
      %1138 = vmatpush.msra.mxu0 %v1062
      %1139 = vmatpush.msra.mxu0 %v1058
      %1140 = vmatpush.msra.mxu0 %v1054
      %1141 = vmatpush.msra.mxu0 %v1050
      %1142 = vmatmul.f32.gmra.mxu0 %v1049
      %v1143 = vpop.f32.mrf.mxu0
      %v1144 = vadd.f32 %v1118, %v1143
      %1145 = vdwg.mxu0
      %1146 = vmatpush.msra.mxu0 %v1111
      %1147 = vmatpush.msra.mxu0 %v1107
      %1148 = vmatpush.msra.mxu0 %v1103
      %1149 = vmatpush.msra.mxu0 %v1099
      %1150 = vmatpush.msra.mxu0 %v1095
      %1151 = vmatpush.msra.mxu0 %v1091
      %1152 = vmatpush.msra.mxu0 %v1087
      %1153 = vmatpush.msra.mxu0 %v1083
      %1154 = vmatpush.msra.mxu0 %v1079
      %1155 = vmatpush.msra.mxu0 %v1075
      %1156 = vmatpush.msra.mxu0 %v1071
      %1157 = vmatpush.msra.mxu0 %v1067
      %1158 = vmatpush.msra.mxu0 %v1063
      %1159 = vmatpush.msra.mxu0 %v1059
      %1160 = vmatpush.msra.mxu0 %v1055
      %1161 = vmatpush.msra.mxu0 %v1051
      %1162 = vmatmul.f32.gmra.mxu0 %v1049
      %v1163 = vpop.f32.mrf.mxu0
      %v1164 = vadd.f32 %v1119, %v1163
      %1165 = vdwg.mxu0
      %1166 = vmatpush.msra.mxu0 %v1112
      %1167 = vmatpush.msra.mxu0 %v1108
      %1168 = vmatpush.msra.mxu0 %v1104
      %1169 = vmatpush.msra.mxu0 %v1100
      %1170 = vmatpush.msra.mxu0 %v1096
      %1171 = vmatpush.msra.mxu0 %v1092
      %1172 = vmatpush.msra.mxu0 %v1088
      %1173 = vmatpush.msra.mxu0 %v1084
      %1174 = vmatpush.msra.mxu0 %v1080
      %1175 = vmatpush.msra.mxu0 %v1076
      %1176 = vmatpush.msra.mxu0 %v1072
      %1177 = vmatpush.msra.mxu0 %v1068
      %1178 = vmatpush.msra.mxu0 %v1064
      %1179 = vmatpush.msra.mxu0 %v1060
      %1180 = vmatpush.msra.mxu0 %v1056
      %1181 = vmatpush.msra.mxu0 %v1052
      %1182 = vmatmul.f32.gmra.mxu0 %v1049
      %v1183 = vpop.f32.mrf.mxu0
      %v1184 = vadd.f32 %v1120, %v1183
      %1185 = vdwg.mxu0
      %1186 = vmatpush.msra.mxu0 %v1113
      %1187 = vmatpush.msra.mxu0 %v1109
      %1188 = vmatpush.msra.mxu0 %v1105
      %1189 = vmatpush.msra.mxu0 %v1101
      %1190 = vmatpush.msra.mxu0 %v1097
      %1191 = vmatpush.msra.mxu0 %v1093
      %1192 = vmatpush.msra.mxu0 %v1089
      %1193 = vmatpush.msra.mxu0 %v1085
      %1194 = vmatpush.msra.mxu0 %v1081
      %1195 = vmatpush.msra.mxu0 %v1077
      %1196 = vmatpush.msra.mxu0 %v1073
      %1197 = vmatpush.msra.mxu0 %v1069
      %1198 = vmatpush.msra.mxu0 %v1065
      %1199 = vmatpush.msra.mxu0 %v1061
      %1200 = vmatpush.msra.mxu0 %v1057
      %1201 = vmatpush.msra.mxu0 %v1053
      %1202 = vmatmul.f32.gmra.mxu0 %v1049
      %v1203 = vpop.f32.mrf.mxu0
      %v1204 = vadd.f32 %v1121, %v1203
      %1205 = vdwg.mxu0
      %v1206 = vld [vmem:[#allocation3] sm:$0x3]
      %v1207 = vxor.u32 %v1144, 2147483648
      %v1208 = vmul.f32 %v1207, 1.442695
      %v1209 = vpow.pop %v1208
      %v1210 = vadd.f32 %v1209, 1.0
      %v1211 = vrcp.pop %v1210
      %v1212 = vmul.f32 %v1210, %v1211
      %v1213 = vsub.f32 1.0, %v1212
      %v1214 = vmul.f32 %v1211, %v1213
      %v1215 = vadd.f32 %v1211, %v1214
      %vm1216 = vweird.f32 %v1210
      %vm1217 = vweird.f32 %v1211
      %vm1218 = vmor %vm1216, %vm1217
      %v1219 = vsel %vm1218, %v1211, %v1215
      %v1220 = vand.u32 2147483647, %v1210
      %vm1221 = vcmp.eq.f32.partialorder %v1220, 8.507059e+37
      %v1222 = vand.u32 %v1210, 2147483648
      %v1223 = vor.u32 1.1754944e-38, %v1222
      %v1224 = vsel %vm1221, %v1223, %v1219
      %v1225 = vmul.f32 1.0, %v1224
      %v1226 = vxor.u32 %v1164, 2147483648
      %v1227 = vmul.f32 %v1226, 1.442695
      %v1228 = vpow.pop %v1227
      %v1229 = vadd.f32 %v1228, 1.0
      %v1230 = vrcp.pop %v1229
      %v1231 = vmul.f32 %v1229, %v1230
      %v1232 = vsub.f32 1.0, %v1231
      %v1233 = vmul.f32 %v1230, %v1232
      %v1234 = vadd.f32 %v1230, %v1233
      %vm1235 = vweird.f32 %v1229
      %vm1236 = vweird.f32 %v1230
      %vm1237 = vmor %vm1235, %vm1236
      %v1238 = vsel %vm1237, %v1230, %v1234
      %v1239 = vand.u32 2147483647, %v1229
      %vm1240 = vcmp.eq.f32.partialorder %v1239, 8.507059e+37
      %v1241 = vand.u32 %v1229, 2147483648
      %v1242 = vor.u32 1.1754944e-38, %v1241
      %v1243 = vsel %vm1240, %v1242, %v1238
      %v1244 = vmul.f32 1.0, %v1243
      %v1245 = vtanh.pop %v1184
      %v1246 = vxor.u32 %v1204, 2147483648
      %v1247 = vmul.f32 %v1246, 1.442695
      %v1248 = vpow.pop %v1247
      %v1249 = vadd.f32 %v1248, 1.0
      %v1250 = vrcp.pop %v1249
      %v1251 = vmul.f32 %v1249, %v1250
      %v1252 = vsub.f32 1.0, %v1251
      %v1253 = vmul.f32 %v1250, %v1252
      %v1254 = vadd.f32 %v1250, %v1253
      %vm1255 = vweird.f32 %v1249
      %vm1256 = vweird.f32 %v1250
      %vm1257 = vmor %vm1255, %vm1256
      %v1258 = vsel %vm1257, %v1250, %v1254
      %v1259 = vand.u32 2147483647, %v1249
      %vm1260 = vcmp.eq.f32.partialorder %v1259, 8.507059e+37
      %v1261 = vand.u32 %v1249, 2147483648
      %v1262 = vor.u32 1.1754944e-38, %v1261
      %v1263 = vsel %vm1260, %v1262, %v1258
      %v1264 = vmul.f32 1.0, %v1263
      %v1265 = vmul.f32 %v1244, %v1206
      %v1266 = vmul.f32 %v1225, %v1245
      %v1267 = vadd.f32 %v1265, %v1266
      %v1268 = vtanh.pop %v1267
      %v1269 = vmul.f32 %v1264, %v1268
      %1270 = vst [vmem:[#allocation2] sm:$0x3] %v1269
      %1271 = vst [vmem:[#allocation3] sm:$0x3] %v1267
    $region53: #{tpu_custom_call.1} parent=1 // pred_fallthru
      _
    %s1272 = sadd.s32 %s133, 5
    %p1273 = scmp.lt.s32.totalorder %s1272, 8
    // Predicated region
    $region54: #{tpu_custom_call.1} parent=1 // pred_check
      %p1274 = pneg %p1273
    $region55: #{tpu_custom_call.1} parent=1 // pred_check_branch
      %1276 = sbr.rel (%p1274) target = $region57
    $region56: #{tpu_custom_call.1} parent=1 // pred_region
      %v1277 = vld [vmem:[#allocation2] sm:$0x3]
      %v1278 = vld [vmem:[#allocation7] sm:$0xff]
      %v1279 = vld [vmem:[#allocation7 + $0x8] sm:$0xff]
      %v1280 = vld [vmem:[#allocation7 + $0x10] sm:$0xff]
      %v1281 = vld [vmem:[#allocation7 + $0x18] sm:$0xff]
      %v1282 = vld [vmem:[#allocation7 + $0x20] sm:$0xff]
      %v1283 = vld [vmem:[#allocation7 + $0x28] sm:$0xff]
      %v1284 = vld [vmem:[#allocation7 + $0x30] sm:$0xff]
      %v1285 = vld [vmem:[#allocation7 + $0x38] sm:$0xff]
      %v1286 = vld [vmem:[#allocation7 + $0x40] sm:$0xff]
      %v1287 = vld [vmem:[#allocation7 + $0x48] sm:$0xff]
      %v1288 = vld [vmem:[#allocation7 + $0x50] sm:$0xff]
      %v1289 = vld [vmem:[#allocation7 + $0x58] sm:$0xff]
      %v1290 = vld [vmem:[#allocation7 + $0x60] sm:$0xff]
      %v1291 = vld [vmem:[#allocation7 + $0x68] sm:$0xff]
      %v1292 = vld [vmem:[#allocation7 + $0x70] sm:$0xff]
      %v1293 = vld [vmem:[#allocation7 + $0x78] sm:$0xff]
      %v1294 = vld [vmem:[#allocation7 + $0x80] sm:$0xff]
      %v1295 = vld [vmem:[#allocation7 + $0x88] sm:$0xff]
      %v1296 = vld [vmem:[#allocation7 + $0x90] sm:$0xff]
      %v1297 = vld [vmem:[#allocation7 + $0x98] sm:$0xff]
      %v1298 = vld [vmem:[#allocation7 + $0xa0] sm:$0xff]
      %v1299 = vld [vmem:[#allocation7 + $0xa8] sm:$0xff]
      %v1300 = vld [vmem:[#allocation7 + $0xb0] sm:$0xff]
      %v1301 = vld [vmem:[#allocation7 + $0xb8] sm:$0xff]
      %v1302 = vld [vmem:[#allocation7 + $0xc0] sm:$0xff]
      %v1303 = vld [vmem:[#allocation7 + $0xc8] sm:$0xff]
      %v1304 = vld [vmem:[#allocation7 + $0xd0] sm:$0xff]
      %v1305 = vld [vmem:[#allocation7 + $0xd8] sm:$0xff]
      %v1306 = vld [vmem:[#allocation7 + $0xe0] sm:$0xff]
      %v1307 = vld [vmem:[#allocation7 + $0xe8] sm:$0xff]
      %v1308 = vld [vmem:[#allocation7 + $0xf0] sm:$0xff]
      %v1309 = vld [vmem:[#allocation7 + $0xf8] sm:$0xff]
      %v1310 = vld [vmem:[#allocation7 + $0x100] sm:$0xff]
      %v1311 = vld [vmem:[#allocation7 + $0x108] sm:$0xff]
      %v1312 = vld [vmem:[#allocation7 + $0x110] sm:$0xff]
      %v1313 = vld [vmem:[#allocation7 + $0x118] sm:$0xff]
      %v1314 = vld [vmem:[#allocation7 + $0x120] sm:$0xff]
      %v1315 = vld [vmem:[#allocation7 + $0x128] sm:$0xff]
      %v1316 = vld [vmem:[#allocation7 + $0x130] sm:$0xff]
      %v1317 = vld [vmem:[#allocation7 + $0x138] sm:$0xff]
      %v1318 = vld [vmem:[#allocation7 + $0x140] sm:$0xff]
      %v1319 = vld [vmem:[#allocation7 + $0x148] sm:$0xff]
      %v1320 = vld [vmem:[#allocation7 + $0x150] sm:$0xff]
      %v1321 = vld [vmem:[#allocation7 + $0x158] sm:$0xff]
      %v1322 = vld [vmem:[#allocation7 + $0x160] sm:$0xff]
      %v1323 = vld [vmem:[#allocation7 + $0x168] sm:$0xff]
      %v1324 = vld [vmem:[#allocation7 + $0x170] sm:$0xff]
      %v1325 = vld [vmem:[#allocation7 + $0x178] sm:$0xff]
      %v1326 = vld [vmem:[#allocation7 + $0x180] sm:$0xff]
      %v1327 = vld [vmem:[#allocation7 + $0x188] sm:$0xff]
      %v1328 = vld [vmem:[#allocation7 + $0x190] sm:$0xff]
      %v1329 = vld [vmem:[#allocation7 + $0x198] sm:$0xff]
      %v1330 = vld [vmem:[#allocation7 + $0x1a0] sm:$0xff]
      %v1331 = vld [vmem:[#allocation7 + $0x1a8] sm:$0xff]
      %v1332 = vld [vmem:[#allocation7 + $0x1b0] sm:$0xff]
      %v1333 = vld [vmem:[#allocation7 + $0x1b8] sm:$0xff]
      %v1334 = vld [vmem:[#allocation7 + $0x1c0] sm:$0xff]
      %v1335 = vld [vmem:[#allocation7 + $0x1c8] sm:$0xff]
      %v1336 = vld [vmem:[#allocation7 + $0x1d0] sm:$0xff]
      %v1337 = vld [vmem:[#allocation7 + $0x1d8] sm:$0xff]
      %v1338 = vld [vmem:[#allocation7 + $0x1e0] sm:$0xff]
      %v1339 = vld [vmem:[#allocation7 + $0x1e8] sm:$0xff]
      %v1340 = vld [vmem:[#allocation7 + $0x1f0] sm:$0xff]
      %v1341 = vld [vmem:[#allocation7 + $0x1f8] sm:$0xff]
      %s1342 = scalar_lea.vmem %s1, 40
      %v1343 = vld [vmem:[%s1342] sm:$0xff]
      %1345 = vst [vmem:[#allocation1] ss:$4 sm:$0xff] %v1343
      %v1346 = vld.sshfl [vmem:[#allocation1] sm:$0xff pattern:$0x73625140]
      %v1347 = vld.sshfl [vmem:[#allocation1 + $0x8] sm:$0xff pattern:$0x73625140]
      %v1348 = vld.sshfl [vmem:[#allocation1 + $0x10] sm:$0xff pattern:$0x73625140]
      %v1349 = vld.sshfl [vmem:[#allocation1 + $0x18] sm:$0xff pattern:$0x73625140]
      %1354 = vmatpush.msra.mxu0 %v1338
      %1355 = vmatpush.msra.mxu0 %v1334
      %1356 = vmatpush.msra.mxu0 %v1330
      %1357 = vmatpush.msra.mxu0 %v1326
      %1358 = vmatpush.msra.mxu0 %v1322
      %1359 = vmatpush.msra.mxu0 %v1318
      %1360 = vmatpush.msra.mxu0 %v1314
      %1361 = vmatpush.msra.mxu0 %v1310
      %1362 = vmatpush.msra.mxu0 %v1306
      %1363 = vmatpush.msra.mxu0 %v1302
      %1364 = vmatpush.msra.mxu0 %v1298
      %1365 = vmatpush.msra.mxu0 %v1294
      %1366 = vmatpush.msra.mxu0 %v1290
      %1367 = vmatpush.msra.mxu0 %v1286
      %1368 = vmatpush.msra.mxu0 %v1282
      %1369 = vmatpush.msra.mxu0 %v1278
      %1370 = vmatmul.f32.gmra.mxu0 %v1277
      %v1371 = vpop.f32.mrf.mxu0
      %v1372 = vadd.f32 %v1346, %v1371
      %1373 = vdwg.mxu0
      %1374 = vmatpush.msra.mxu0 %v1339
      %1375 = vmatpush.msra.mxu0 %v1335
      %1376 = vmatpush.msra.mxu0 %v1331
      %1377 = vmatpush.msra.mxu0 %v1327
      %1378 = vmatpush.msra.mxu0 %v1323
      %1379 = vmatpush.msra.mxu0 %v1319
      %1380 = vmatpush.msra.mxu0 %v1315
      %1381 = vmatpush.msra.mxu0 %v1311
      %1382 = vmatpush.msra.mxu0 %v1307
      %1383 = vmatpush.msra.mxu0 %v1303
      %1384 = vmatpush.msra.mxu0 %v1299
      %1385 = vmatpush.msra.mxu0 %v1295
      %1386 = vmatpush.msra.mxu0 %v1291
      %1387 = vmatpush.msra.mxu0 %v1287
      %1388 = vmatpush.msra.mxu0 %v1283
      %1389 = vmatpush.msra.mxu0 %v1279
      %1390 = vmatmul.f32.gmra.mxu0 %v1277
      %v1391 = vpop.f32.mrf.mxu0
      %v1392 = vadd.f32 %v1347, %v1391
      %1393 = vdwg.mxu0
      %1394 = vmatpush.msra.mxu0 %v1340
      %1395 = vmatpush.msra.mxu0 %v1336
      %1396 = vmatpush.msra.mxu0 %v1332
      %1397 = vmatpush.msra.mxu0 %v1328
      %1398 = vmatpush.msra.mxu0 %v1324
      %1399 = vmatpush.msra.mxu0 %v1320
      %1400 = vmatpush.msra.mxu0 %v1316
      %1401 = vmatpush.msra.mxu0 %v1312
      %1402 = vmatpush.msra.mxu0 %v1308
      %1403 = vmatpush.msra.mxu0 %v1304
      %1404 = vmatpush.msra.mxu0 %v1300
      %1405 = vmatpush.msra.mxu0 %v1296
      %1406 = vmatpush.msra.mxu0 %v1292
      %1407 = vmatpush.msra.mxu0 %v1288
      %1408 = vmatpush.msra.mxu0 %v1284
      %1409 = vmatpush.msra.mxu0 %v1280
      %1410 = vmatmul.f32.gmra.mxu0 %v1277
      %v1411 = vpop.f32.mrf.mxu0
      %v1412 = vadd.f32 %v1348, %v1411
      %1413 = vdwg.mxu0
      %1414 = vmatpush.msra.mxu0 %v1341
      %1415 = vmatpush.msra.mxu0 %v1337
      %1416 = vmatpush.msra.mxu0 %v1333
      %1417 = vmatpush.msra.mxu0 %v1329
      %1418 = vmatpush.msra.mxu0 %v1325
      %1419 = vmatpush.msra.mxu0 %v1321
      %1420 = vmatpush.msra.mxu0 %v1317
      %1421 = vmatpush.msra.mxu0 %v1313
      %1422 = vmatpush.msra.mxu0 %v1309
      %1423 = vmatpush.msra.mxu0 %v1305
      %1424 = vmatpush.msra.mxu0 %v1301
      %1425 = vmatpush.msra.mxu0 %v1297
      %1426 = vmatpush.msra.mxu0 %v1293
      %1427 = vmatpush.msra.mxu0 %v1289
      %1428 = vmatpush.msra.mxu0 %v1285
      %1429 = vmatpush.msra.mxu0 %v1281
      %1430 = vmatmul.f32.gmra.mxu0 %v1277
      %v1431 = vpop.f32.mrf.mxu0
      %v1432 = vadd.f32 %v1349, %v1431
      %1433 = vdwg.mxu0
      %v1434 = vld [vmem:[#allocation3] sm:$0x3]
      %v1435 = vxor.u32 %v1372, 2147483648
      %v1436 = vmul.f32 %v1435, 1.442695
      %v1437 = vpow.pop %v1436
      %v1438 = vadd.f32 %v1437, 1.0
      %v1439 = vrcp.pop %v1438
      %v1440 = vmul.f32 %v1438, %v1439
      %v1441 = vsub.f32 1.0, %v1440
      %v1442 = vmul.f32 %v1439, %v1441
      %v1443 = vadd.f32 %v1439, %v1442
      %vm1444 = vweird.f32 %v1438
      %vm1445 = vweird.f32 %v1439
      %vm1446 = vmor %vm1444, %vm1445
      %v1447 = vsel %vm1446, %v1439, %v1443
      %v1448 = vand.u32 2147483647, %v1438
      %vm1449 = vcmp.eq.f32.partialorder %v1448, 8.507059e+37
      %v1450 = vand.u32 %v1438, 2147483648
      %v1451 = vor.u32 1.1754944e-38, %v1450
      %v1452 = vsel %vm1449, %v1451, %v1447
      %v1453 = vmul.f32 1.0, %v1452
      %v1454 = vxor.u32 %v1392, 2147483648
      %v1455 = vmul.f32 %v1454, 1.442695
      %v1456 = vpow.pop %v1455
      %v1457 = vadd.f32 %v1456, 1.0
      %v1458 = vrcp.pop %v1457
      %v1459 = vmul.f32 %v1457, %v1458
      %v1460 = vsub.f32 1.0, %v1459
      %v1461 = vmul.f32 %v1458, %v1460
      %v1462 = vadd.f32 %v1458, %v1461
      %vm1463 = vweird.f32 %v1457
      %vm1464 = vweird.f32 %v1458
      %vm1465 = vmor %vm1463, %vm1464
      %v1466 = vsel %vm1465, %v1458, %v1462
      %v1467 = vand.u32 2147483647, %v1457
      %vm1468 = vcmp.eq.f32.partialorder %v1467, 8.507059e+37
      %v1469 = vand.u32 %v1457, 2147483648
      %v1470 = vor.u32 1.1754944e-38, %v1469
      %v1471 = vsel %vm1468, %v1470, %v1466
      %v1472 = vmul.f32 1.0, %v1471
      %v1473 = vtanh.pop %v1412
      %v1474 = vxor.u32 %v1432, 2147483648
      %v1475 = vmul.f32 %v1474, 1.442695
      %v1476 = vpow.pop %v1475
      %v1477 = vadd.f32 %v1476, 1.0
      %v1478 = vrcp.pop %v1477
      %v1479 = vmul.f32 %v1477, %v1478
      %v1480 = vsub.f32 1.0, %v1479
      %v1481 = vmul.f32 %v1478, %v1480
      %v1482 = vadd.f32 %v1478, %v1481
      %vm1483 = vweird.f32 %v1477
      %vm1484 = vweird.f32 %v1478
      %vm1485 = vmor %vm1483, %vm1484
      %v1486 = vsel %vm1485, %v1478, %v1482
      %v1487 = vand.u32 2147483647, %v1477
      %vm1488 = vcmp.eq.f32.partialorder %v1487, 8.507059e+37
      %v1489 = vand.u32 %v1477, 2147483648
      %v1490 = vor.u32 1.1754944e-38, %v1489
      %v1491 = vsel %vm1488, %v1490, %v1486
      %v1492 = vmul.f32 1.0, %v1491
      %v1493 = vmul.f32 %v1472, %v1434
      %v1494 = vmul.f32 %v1453, %v1473
      %v1495 = vadd.f32 %v1493, %v1494
      %v1496 = vtanh.pop %v1495
      %v1497 = vmul.f32 %v1492, %v1496
      %1498 = vst [vmem:[#allocation2] sm:$0x3] %v1497
      %1499 = vst [vmem:[#allocation3] sm:$0x3] %v1495
    $region57: #{tpu_custom_call.1} parent=1 // pred_fallthru
      _
    %s1500 = sadd.s32 %s133, 6
    %p1501 = scmp.lt.s32.totalorder %s1500, 8
    // Predicated region
    $region58: #{tpu_custom_call.1} parent=1 // pred_check
      %p1502 = pneg %p1501
    $region59: #{tpu_custom_call.1} parent=1 // pred_check_branch
      %1504 = sbr.rel (%p1502) target = $region61
    $region60: #{tpu_custom_call.1} parent=1 // pred_region
      %v1505 = vld [vmem:[#allocation2] sm:$0x3]
      %v1506 = vld [vmem:[#allocation7] sm:$0xff]
      %v1507 = vld [vmem:[#allocation7 + $0x8] sm:$0xff]
      %v1508 = vld [vmem:[#allocation7 + $0x10] sm:$0xff]
      %v1509 = vld [vmem:[#allocation7 + $0x18] sm:$0xff]
      %v1510 = vld [vmem:[#allocation7 + $0x20] sm:$0xff]
      %v1511 = vld [vmem:[#allocation7 + $0x28] sm:$0xff]
      %v1512 = vld [vmem:[#allocation7 + $0x30] sm:$0xff]
      %v1513 = vld [vmem:[#allocation7 + $0x38] sm:$0xff]
      %v1514 = vld [vmem:[#allocation7 + $0x40] sm:$0xff]
      %v1515 = vld [vmem:[#allocation7 + $0x48] sm:$0xff]
      %v1516 = vld [vmem:[#allocation7 + $0x50] sm:$0xff]
      %v1517 = vld [vmem:[#allocation7 + $0x58] sm:$0xff]
      %v1518 = vld [vmem:[#allocation7 + $0x60] sm:$0xff]
      %v1519 = vld [vmem:[#allocation7 + $0x68] sm:$0xff]
      %v1520 = vld [vmem:[#allocation7 + $0x70] sm:$0xff]
      %v1521 = vld [vmem:[#allocation7 + $0x78] sm:$0xff]
      %v1522 = vld [vmem:[#allocation7 + $0x80] sm:$0xff]
      %v1523 = vld [vmem:[#allocation7 + $0x88] sm:$0xff]
      %v1524 = vld [vmem:[#allocation7 + $0x90] sm:$0xff]
      %v1525 = vld [vmem:[#allocation7 + $0x98] sm:$0xff]
      %v1526 = vld [vmem:[#allocation7 + $0xa0] sm:$0xff]
      %v1527 = vld [vmem:[#allocation7 + $0xa8] sm:$0xff]
      %v1528 = vld [vmem:[#allocation7 + $0xb0] sm:$0xff]
      %v1529 = vld [vmem:[#allocation7 + $0xb8] sm:$0xff]
      %v1530 = vld [vmem:[#allocation7 + $0xc0] sm:$0xff]
      %v1531 = vld [vmem:[#allocation7 + $0xc8] sm:$0xff]
      %v1532 = vld [vmem:[#allocation7 + $0xd0] sm:$0xff]
      %v1533 = vld [vmem:[#allocation7 + $0xd8] sm:$0xff]
      %v1534 = vld [vmem:[#allocation7 + $0xe0] sm:$0xff]
      %v1535 = vld [vmem:[#allocation7 + $0xe8] sm:$0xff]
      %v1536 = vld [vmem:[#allocation7 + $0xf0] sm:$0xff]
      %v1537 = vld [vmem:[#allocation7 + $0xf8] sm:$0xff]
      %v1538 = vld [vmem:[#allocation7 + $0x100] sm:$0xff]
      %v1539 = vld [vmem:[#allocation7 + $0x108] sm:$0xff]
      %v1540 = vld [vmem:[#allocation7 + $0x110] sm:$0xff]
      %v1541 = vld [vmem:[#allocation7 + $0x118] sm:$0xff]
      %v1542 = vld [vmem:[#allocation7 + $0x120] sm:$0xff]
      %v1543 = vld [vmem:[#allocation7 + $0x128] sm:$0xff]
      %v1544 = vld [vmem:[#allocation7 + $0x130] sm:$0xff]
      %v1545 = vld [vmem:[#allocation7 + $0x138] sm:$0xff]
      %v1546 = vld [vmem:[#allocation7 + $0x140] sm:$0xff]
      %v1547 = vld [vmem:[#allocation7 + $0x148] sm:$0xff]
      %v1548 = vld [vmem:[#allocation7 + $0x150] sm:$0xff]
      %v1549 = vld [vmem:[#allocation7 + $0x158] sm:$0xff]
      %v1550 = vld [vmem:[#allocation7 + $0x160] sm:$0xff]
      %v1551 = vld [vmem:[#allocation7 + $0x168] sm:$0xff]
      %v1552 = vld [vmem:[#allocation7 + $0x170] sm:$0xff]
      %v1553 = vld [vmem:[#allocation7 + $0x178] sm:$0xff]
      %v1554 = vld [vmem:[#allocation7 + $0x180] sm:$0xff]
      %v1555 = vld [vmem:[#allocation7 + $0x188] sm:$0xff]
      %v1556 = vld [vmem:[#allocation7 + $0x190] sm:$0xff]
      %v1557 = vld [vmem:[#allocation7 + $0x198] sm:$0xff]
      %v1558 = vld [vmem:[#allocation7 + $0x1a0] sm:$0xff]
      %v1559 = vld [vmem:[#allocation7 + $0x1a8] sm:$0xff]
      %v1560 = vld [vmem:[#allocation7 + $0x1b0] sm:$0xff]
      %v1561 = vld [vmem:[#allocation7 + $0x1b8] sm:$0xff]
      %v1562 = vld [vmem:[#allocation7 + $0x1c0] sm:$0xff]
      %v1563 = vld [vmem:[#allocation7 + $0x1c8] sm:$0xff]
      %v1564 = vld [vmem:[#allocation7 + $0x1d0] sm:$0xff]
      %v1565 = vld [vmem:[#allocation7 + $0x1d8] sm:$0xff]
      %v1566 = vld [vmem:[#allocation7 + $0x1e0] sm:$0xff]
      %v1567 = vld [vmem:[#allocation7 + $0x1e8] sm:$0xff]
      %v1568 = vld [vmem:[#allocation7 + $0x1f0] sm:$0xff]
      %v1569 = vld [vmem:[#allocation7 + $0x1f8] sm:$0xff]
      %s1570 = scalar_lea.vmem %s1, 48
      %v1571 = vld [vmem:[%s1570] sm:$0xff]
      %1573 = vst [vmem:[#allocation1] ss:$4 sm:$0xff] %v1571
      %v1574 = vld.sshfl [vmem:[#allocation1] sm:$0xff pattern:$0x73625140]
      %v1575 = vld.sshfl [vmem:[#allocation1 + $0x8] sm:$0xff pattern:$0x73625140]
      %v1576 = vld.sshfl [vmem:[#allocation1 + $0x10] sm:$0xff pattern:$0x73625140]
      %v1577 = vld.sshfl [vmem:[#allocation1 + $0x18] sm:$0xff pattern:$0x73625140]
      %1582 = vmatpush.msra.mxu0 %v1566
      %1583 = vmatpush.msra.mxu0 %v1562
      %1584 = vmatpush.msra.mxu0 %v1558
      %1585 = vmatpush.msra.mxu0 %v1554
      %1586 = vmatpush.msra.mxu0 %v1550
      %1587 = vmatpush.msra.mxu0 %v1546
      %1588 = vmatpush.msra.mxu0 %v1542
      %1589 = vmatpush.msra.mxu0 %v1538
      %1590 = vmatpush.msra.mxu0 %v1534
      %1591 = vmatpush.msra.mxu0 %v1530
      %1592 = vmatpush.msra.mxu0 %v1526
      %1593 = vmatpush.msra.mxu0 %v1522
      %1594 = vmatpush.msra.mxu0 %v1518
      %1595 = vmatpush.msra.mxu0 %v1514
      %1596 = vmatpush.msra.mxu0 %v1510
      %1597 = vmatpush.msra.mxu0 %v1506
      %1598 = vmatmul.f32.gmra.mxu0 %v1505
      %v1599 = vpop.f32.mrf.mxu0
      %v1600 = vadd.f32 %v1574, %v1599
      %1601 = vdwg.mxu0
      %1602 = vmatpush.msra.mxu0 %v1567
      %1603 = vmatpush.msra.mxu0 %v1563
      %1604 = vmatpush.msra.mxu0 %v1559
      %1605 = vmatpush.msra.mxu0 %v1555
      %1606 = vmatpush.msra.mxu0 %v1551
      %1607 = vmatpush.msra.mxu0 %v1547
      %1608 = vmatpush.msra.mxu0 %v1543
      %1609 = vmatpush.msra.mxu0 %v1539
      %1610 = vmatpush.msra.mxu0 %v1535
      %1611 = vmatpush.msra.mxu0 %v1531
      %1612 = vmatpush.msra.mxu0 %v1527
      %1613 = vmatpush.msra.mxu0 %v1523
      %1614 = vmatpush.msra.mxu0 %v1519
      %1615 = vmatpush.msra.mxu0 %v1515
      %1616 = vmatpush.msra.mxu0 %v1511
      %1617 = vmatpush.msra.mxu0 %v1507
      %1618 = vmatmul.f32.gmra.mxu0 %v1505
      %v1619 = vpop.f32.mrf.mxu0
      %v1620 = vadd.f32 %v1575, %v1619
      %1621 = vdwg.mxu0
      %1622 = vmatpush.msra.mxu0 %v1568
      %1623 = vmatpush.msra.mxu0 %v1564
      %1624 = vmatpush.msra.mxu0 %v1560
      %1625 = vmatpush.msra.mxu0 %v1556
      %1626 = vmatpush.msra.mxu0 %v1552
      %1627 = vmatpush.msra.mxu0 %v1548
      %1628 = vmatpush.msra.mxu0 %v1544
      %1629 = vmatpush.msra.mxu0 %v1540
      %1630 = vmatpush.msra.mxu0 %v1536
      %1631 = vmatpush.msra.mxu0 %v1532
      %1632 = vmatpush.msra.mxu0 %v1528
      %1633 = vmatpush.msra.mxu0 %v1524
      %1634 = vmatpush.msra.mxu0 %v1520
      %1635 = vmatpush.msra.mxu0 %v1516
      %1636 = vmatpush.msra.mxu0 %v1512
      %1637 = vmatpush.msra.mxu0 %v1508
      %1638 = vmatmul.f32.gmra.mxu0 %v1505
      %v1639 = vpop.f32.mrf.mxu0
      %v1640 = vadd.f32 %v1576, %v1639
      %1641 = vdwg.mxu0
      %1642 = vmatpush.msra.mxu0 %v1569
      %1643 = vmatpush.msra.mxu0 %v1565
      %1644 = vmatpush.msra.mxu0 %v1561
      %1645 = vmatpush.msra.mxu0 %v1557
      %1646 = vmatpush.msra.mxu0 %v1553
      %1647 = vmatpush.msra.mxu0 %v1549
      %1648 = vmatpush.msra.mxu0 %v1545
      %1649 = vmatpush.msra.mxu0 %v1541
      %1650 = vmatpush.msra.mxu0 %v1537
      %1651 = vmatpush.msra.mxu0 %v1533
      %1652 = vmatpush.msra.mxu0 %v1529
      %1653 = vmatpush.msra.mxu0 %v1525
      %1654 = vmatpush.msra.mxu0 %v1521
      %1655 = vmatpush.msra.mxu0 %v1517
      %1656 = vmatpush.msra.mxu0 %v1513
      %1657 = vmatpush.msra.mxu0 %v1509
      %1658 = vmatmul.f32.gmra.mxu0 %v1505
      %v1659 = vpop.f32.mrf.mxu0
      %v1660 = vadd.f32 %v1577, %v1659
      %1661 = vdwg.mxu0
      %v1662 = vld [vmem:[#allocation3] sm:$0x3]
      %v1663 = vxor.u32 %v1600, 2147483648
      %v1664 = vmul.f32 %v1663, 1.442695
      %v1665 = vpow.pop %v1664
      %v1666 = vadd.f32 %v1665, 1.0
      %v1667 = vrcp.pop %v1666
      %v1668 = vmul.f32 %v1666, %v1667
      %v1669 = vsub.f32 1.0, %v1668
      %v1670 = vmul.f32 %v1667, %v1669
      %v1671 = vadd.f32 %v1667, %v1670
      %vm1672 = vweird.f32 %v1666
      %vm1673 = vweird.f32 %v1667
      %vm1674 = vmor %vm1672, %vm1673
      %v1675 = vsel %vm1674, %v1667, %v1671
      %v1676 = vand.u32 2147483647, %v1666
      %vm1677 = vcmp.eq.f32.partialorder %v1676, 8.507059e+37
      %v1678 = vand.u32 %v1666, 2147483648
      %v1679 = vor.u32 1.1754944e-38, %v1678
      %v1680 = vsel %vm1677, %v1679, %v1675
      %v1681 = vmul.f32 1.0, %v1680
      %v1682 = vxor.u32 %v1620, 2147483648
      %v1683 = vmul.f32 %v1682, 1.442695
      %v1684 = vpow.pop %v1683
      %v1685 = vadd.f32 %v1684, 1.0
      %v1686 = vrcp.pop %v1685
      %v1687 = vmul.f32 %v1685, %v1686
      %v1688 = vsub.f32 1.0, %v1687
      %v1689 = vmul.f32 %v1686, %v1688
      %v1690 = vadd.f32 %v1686, %v1689
      %vm1691 = vweird.f32 %v1685
      %vm1692 = vweird.f32 %v1686
      %vm1693 = vmor %vm1691, %vm1692
      %v1694 = vsel %vm1693, %v1686, %v1690
      %v1695 = vand.u32 2147483647, %v1685
      %vm1696 = vcmp.eq.f32.partialorder %v1695, 8.507059e+37
      %v1697 = vand.u32 %v1685, 2147483648
      %v1698 = vor.u32 1.1754944e-38, %v1697
      %v1699 = vsel %vm1696, %v1698, %v1694
      %v1700 = vmul.f32 1.0, %v1699
      %v1701 = vtanh.pop %v1640
      %v1702 = vxor.u32 %v1660, 2147483648
      %v1703 = vmul.f32 %v1702, 1.442695
      %v1704 = vpow.pop %v1703
      %v1705 = vadd.f32 %v1704, 1.0
      %v1706 = vrcp.pop %v1705
      %v1707 = vmul.f32 %v1705, %v1706
      %v1708 = vsub.f32 1.0, %v1707
      %v1709 = vmul.f32 %v1706, %v1708
      %v1710 = vadd.f32 %v1706, %v1709
      %vm1711 = vweird.f32 %v1705
      %vm1712 = vweird.f32 %v1706
      %vm1713 = vmor %vm1711, %vm1712
      %v1714 = vsel %vm1713, %v1706, %v1710
      %v1715 = vand.u32 2147483647, %v1705
      %vm1716 = vcmp.eq.f32.partialorder %v1715, 8.507059e+37
      %v1717 = vand.u32 %v1705, 2147483648
      %v1718 = vor.u32 1.1754944e-38, %v1717
      %v1719 = vsel %vm1716, %v1718, %v1714
      %v1720 = vmul.f32 1.0, %v1719
      %v1721 = vmul.f32 %v1700, %v1662
      %v1722 = vmul.f32 %v1681, %v1701
      %v1723 = vadd.f32 %v1721, %v1722
      %v1724 = vtanh.pop %v1723
      %v1725 = vmul.f32 %v1720, %v1724
      %1726 = vst [vmem:[#allocation2] sm:$0x3] %v1725
      %1727 = vst [vmem:[#allocation3] sm:$0x3] %v1723
    $region61: #{tpu_custom_call.1} parent=1 // pred_fallthru
      _
    %s1728 = sadd.s32 %s133, 7
    %p1729 = scmp.lt.s32.totalorder %s1728, 8
    // Predicated region
    $region62: #{tpu_custom_call.1} parent=1 // pred_check
      %p1730 = pneg %p1729
    $region63: #{tpu_custom_call.1} parent=1 // pred_check_branch
      %1732 = sbr.rel (%p1730) target = $region65
    $region64: #{tpu_custom_call.1} parent=1 // pred_region
      %v1733 = vld [vmem:[#allocation2] sm:$0x3]
      %v1734 = vld [vmem:[#allocation7] sm:$0xff]
      %v1735 = vld [vmem:[#allocation7 + $0x8] sm:$0xff]
      %v1736 = vld [vmem:[#allocation7 + $0x10] sm:$0xff]
      %v1737 = vld [vmem:[#allocation7 + $0x18] sm:$0xff]
      %v1738 = vld [vmem:[#allocation7 + $0x20] sm:$0xff]
      %v1739 = vld [vmem:[#allocation7 + $0x28] sm:$0xff]
      %v1740 = vld [vmem:[#allocation7 + $0x30] sm:$0xff]
      %v1741 = vld [vmem:[#allocation7 + $0x38] sm:$0xff]
      %v1742 = vld [vmem:[#allocation7 + $0x40] sm:$0xff]
      %v1743 = vld [vmem:[#allocation7 + $0x48] sm:$0xff]
      %v1744 = vld [vmem:[#allocation7 + $0x50] sm:$0xff]
      %v1745 = vld [vmem:[#allocation7 + $0x58] sm:$0xff]
      %v1746 = vld [vmem:[#allocation7 + $0x60] sm:$0xff]
      %v1747 = vld [vmem:[#allocation7 + $0x68] sm:$0xff]
      %v1748 = vld [vmem:[#allocation7 + $0x70] sm:$0xff]
      %v1749 = vld [vmem:[#allocation7 + $0x78] sm:$0xff]
      %v1750 = vld [vmem:[#allocation7 + $0x80] sm:$0xff]
      %v1751 = vld [vmem:[#allocation7 + $0x88] sm:$0xff]
      %v1752 = vld [vmem:[#allocation7 + $0x90] sm:$0xff]
      %v1753 = vld [vmem:[#allocation7 + $0x98] sm:$0xff]
      %v1754 = vld [vmem:[#allocation7 + $0xa0] sm:$0xff]
      %v1755 = vld [vmem:[#allocation7 + $0xa8] sm:$0xff]
      %v1756 = vld [vmem:[#allocation7 + $0xb0] sm:$0xff]
      %v1757 = vld [vmem:[#allocation7 + $0xb8] sm:$0xff]
      %v1758 = vld [vmem:[#allocation7 + $0xc0] sm:$0xff]
      %v1759 = vld [vmem:[#allocation7 + $0xc8] sm:$0xff]
      %v1760 = vld [vmem:[#allocation7 + $0xd0] sm:$0xff]
      %v1761 = vld [vmem:[#allocation7 + $0xd8] sm:$0xff]
      %v1762 = vld [vmem:[#allocation7 + $0xe0] sm:$0xff]
      %v1763 = vld [vmem:[#allocation7 + $0xe8] sm:$0xff]
      %v1764 = vld [vmem:[#allocation7 + $0xf0] sm:$0xff]
      %v1765 = vld [vmem:[#allocation7 + $0xf8] sm:$0xff]
      %v1766 = vld [vmem:[#allocation7 + $0x100] sm:$0xff]
      %v1767 = vld [vmem:[#allocation7 + $0x108] sm:$0xff]
      %v1768 = vld [vmem:[#allocation7 + $0x110] sm:$0xff]
      %v1769 = vld [vmem:[#allocation7 + $0x118] sm:$0xff]
      %v1770 = vld [vmem:[#allocation7 + $0x120] sm:$0xff]
      %v1771 = vld [vmem:[#allocation7 + $0x128] sm:$0xff]
      %v1772 = vld [vmem:[#allocation7 + $0x130] sm:$0xff]
      %v1773 = vld [vmem:[#allocation7 + $0x138] sm:$0xff]
      %v1774 = vld [vmem:[#allocation7 + $0x140] sm:$0xff]
      %v1775 = vld [vmem:[#allocation7 + $0x148] sm:$0xff]
      %v1776 = vld [vmem:[#allocation7 + $0x150] sm:$0xff]
      %v1777 = vld [vmem:[#allocation7 + $0x158] sm:$0xff]
      %v1778 = vld [vmem:[#allocation7 + $0x160] sm:$0xff]
      %v1779 = vld [vmem:[#allocation7 + $0x168] sm:$0xff]
      %v1780 = vld [vmem:[#allocation7 + $0x170] sm:$0xff]
      %v1781 = vld [vmem:[#allocation7 + $0x178] sm:$0xff]
      %v1782 = vld [vmem:[#allocation7 + $0x180] sm:$0xff]
      %v1783 = vld [vmem:[#allocation7 + $0x188] sm:$0xff]
      %v1784 = vld [vmem:[#allocation7 + $0x190] sm:$0xff]
      %v1785 = vld [vmem:[#allocation7 + $0x198] sm:$0xff]
      %v1786 = vld [vmem:[#allocation7 + $0x1a0] sm:$0xff]
      %v1787 = vld [vmem:[#allocation7 + $0x1a8] sm:$0xff]
      %v1788 = vld [vmem:[#allocation7 + $0x1b0] sm:$0xff]
      %v1789 = vld [vmem:[#allocation7 + $0x1b8] sm:$0xff]
      %v1790 = vld [vmem:[#allocation7 + $0x1c0] sm:$0xff]
      %v1791 = vld [vmem:[#allocation7 + $0x1c8] sm:$0xff]
      %v1792 = vld [vmem:[#allocation7 + $0x1d0] sm:$0xff]
      %v1793 = vld [vmem:[#allocation7 + $0x1d8] sm:$0xff]
      %v1794 = vld [vmem:[#allocation7 + $0x1e0] sm:$0xff]
      %v1795 = vld [vmem:[#allocation7 + $0x1e8] sm:$0xff]
      %v1796 = vld [vmem:[#allocation7 + $0x1f0] sm:$0xff]
      %v1797 = vld [vmem:[#allocation7 + $0x1f8] sm:$0xff]
      %s1798 = scalar_lea.vmem %s1, 56
      %v1799 = vld [vmem:[%s1798] sm:$0xff]
      %1801 = vst [vmem:[#allocation1] ss:$4 sm:$0xff] %v1799
      %v1802 = vld.sshfl [vmem:[#allocation1] sm:$0xff pattern:$0x73625140]
      %v1803 = vld.sshfl [vmem:[#allocation1 + $0x8] sm:$0xff pattern:$0x73625140]
      %v1804 = vld.sshfl [vmem:[#allocation1 + $0x10] sm:$0xff pattern:$0x73625140]
      %v1805 = vld.sshfl [vmem:[#allocation1 + $0x18] sm:$0xff pattern:$0x73625140]
      %1810 = vmatpush.msra.mxu0 %v1794
      %1811 = vmatpush.msra.mxu0 %v1790
      %1812 = vmatpush.msra.mxu0 %v1786
      %1813 = vmatpush.msra.mxu0 %v1782
      %1814 = vmatpush.msra.mxu0 %v1778
      %1815 = vmatpush.msra.mxu0 %v1774
      %1816 = vmatpush.msra.mxu0 %v1770
      %1817 = vmatpush.msra.mxu0 %v1766
      %1818 = vmatpush.msra.mxu0 %v1762
      %1819 = vmatpush.msra.mxu0 %v1758
      %1820 = vmatpush.msra.mxu0 %v1754
      %1821 = vmatpush.msra.mxu0 %v1750
      %1822 = vmatpush.msra.mxu0 %v1746
      %1823 = vmatpush.msra.mxu0 %v1742
      %1824 = vmatpush.msra.mxu0 %v1738
      %1825 = vmatpush.msra.mxu0 %v1734
      %1826 = vmatmul.f32.gmra.mxu0 %v1733
      %v1827 = vpop.f32.mrf.mxu0
      %v1828 = vadd.f32 %v1802, %v1827
      %1829 = vdwg.mxu0
      %1830 = vmatpush.msra.mxu0 %v1795
      %1831 = vmatpush.msra.mxu0 %v1791
      %1832 = vmatpush.msra.mxu0 %v1787
      %1833 = vmatpush.msra.mxu0 %v1783
      %1834 = vmatpush.msra.mxu0 %v1779
      %1835 = vmatpush.msra.mxu0 %v1775
      %1836 = vmatpush.msra.mxu0 %v1771
      %1837 = vmatpush.msra.mxu0 %v1767
      %1838 = vmatpush.msra.mxu0 %v1763
      %1839 = vmatpush.msra.mxu0 %v1759
      %1840 = vmatpush.msra.mxu0 %v1755
      %1841 = vmatpush.msra.mxu0 %v1751
      %1842 = vmatpush.msra.mxu0 %v1747
      %1843 = vmatpush.msra.mxu0 %v1743
      %1844 = vmatpush.msra.mxu0 %v1739
      %1845 = vmatpush.msra.mxu0 %v1735
      %1846 = vmatmul.f32.gmra.mxu0 %v1733
      %v1847 = vpop.f32.mrf.mxu0
      %v1848 = vadd.f32 %v1803, %v1847
      %1849 = vdwg.mxu0
      %1850 = vmatpush.msra.mxu0 %v1796
      %1851 = vmatpush.msra.mxu0 %v1792
      %1852 = vmatpush.msra.mxu0 %v1788
      %1853 = vmatpush.msra.mxu0 %v1784
      %1854 = vmatpush.msra.mxu0 %v1780
      %1855 = vmatpush.msra.mxu0 %v1776
      %1856 = vmatpush.msra.mxu0 %v1772
      %1857 = vmatpush.msra.mxu0 %v1768
      %1858 = vmatpush.msra.mxu0 %v1764
      %1859 = vmatpush.msra.mxu0 %v1760
      %1860 = vmatpush.msra.mxu0 %v1756
      %1861 = vmatpush.msra.mxu0 %v1752
      %1862 = vmatpush.msra.mxu0 %v1748
      %1863 = vmatpush.msra.mxu0 %v1744
      %1864 = vmatpush.msra.mxu0 %v1740
      %1865 = vmatpush.msra.mxu0 %v1736
      %1866 = vmatmul.f32.gmra.mxu0 %v1733
      %v1867 = vpop.f32.mrf.mxu0
      %v1868 = vadd.f32 %v1804, %v1867
      %1869 = vdwg.mxu0
      %1870 = vmatpush.msra.mxu0 %v1797
      %1871 = vmatpush.msra.mxu0 %v1793
      %1872 = vmatpush.msra.mxu0 %v1789
      %1873 = vmatpush.msra.mxu0 %v1785
      %1874 = vmatpush.msra.mxu0 %v1781
      %1875 = vmatpush.msra.mxu0 %v1777
      %1876 = vmatpush.msra.mxu0 %v1773
      %1877 = vmatpush.msra.mxu0 %v1769
      %1878 = vmatpush.msra.mxu0 %v1765
      %1879 = vmatpush.msra.mxu0 %v1761
      %1880 = vmatpush.msra.mxu0 %v1757
      %1881 = vmatpush.msra.mxu0 %v1753
      %1882 = vmatpush.msra.mxu0 %v1749
      %1883 = vmatpush.msra.mxu0 %v1745
      %1884 = vmatpush.msra.mxu0 %v1741
      %1885 = vmatpush.msra.mxu0 %v1737
      %1886 = vmatmul.f32.gmra.mxu0 %v1733
      %v1887 = vpop.f32.mrf.mxu0
      %v1888 = vadd.f32 %v1805, %v1887
      %1889 = vdwg.mxu0
      %v1890 = vld [vmem:[#allocation3] sm:$0x3]
      %v1891 = vxor.u32 %v1828, 2147483648
      %v1892 = vmul.f32 %v1891, 1.442695
      %v1893 = vpow.pop %v1892
      %v1894 = vadd.f32 %v1893, 1.0
      %v1895 = vrcp.pop %v1894
      %v1896 = vmul.f32 %v1894, %v1895
      %v1897 = vsub.f32 1.0, %v1896
      %v1898 = vmul.f32 %v1895, %v1897
      %v1899 = vadd.f32 %v1895, %v1898
      %vm1900 = vweird.f32 %v1894
      %vm1901 = vweird.f32 %v1895
      %vm1902 = vmor %vm1900, %vm1901
      %v1903 = vsel %vm1902, %v1895, %v1899
      %v1904 = vand.u32 2147483647, %v1894
      %vm1905 = vcmp.eq.f32.partialorder %v1904, 8.507059e+37
      %v1906 = vand.u32 %v1894, 2147483648
      %v1907 = vor.u32 1.1754944e-38, %v1906
      %v1908 = vsel %vm1905, %v1907, %v1903
      %v1909 = vmul.f32 1.0, %v1908
      %v1910 = vxor.u32 %v1848, 2147483648
      %v1911 = vmul.f32 %v1910, 1.442695
      %v1912 = vpow.pop %v1911
      %v1913 = vadd.f32 %v1912, 1.0
      %v1914 = vrcp.pop %v1913
      %v1915 = vmul.f32 %v1913, %v1914
      %v1916 = vsub.f32 1.0, %v1915
      %v1917 = vmul.f32 %v1914, %v1916
      %v1918 = vadd.f32 %v1914, %v1917
      %vm1919 = vweird.f32 %v1913
      %vm1920 = vweird.f32 %v1914
      %vm1921 = vmor %vm1919, %vm1920
      %v1922 = vsel %vm1921, %v1914, %v1918
      %v1923 = vand.u32 2147483647, %v1913
      %vm1924 = vcmp.eq.f32.partialorder %v1923, 8.507059e+37
      %v1925 = vand.u32 %v1913, 2147483648
      %v1926 = vor.u32 1.1754944e-38, %v1925
      %v1927 = vsel %vm1924, %v1926, %v1922
      %v1928 = vmul.f32 1.0, %v1927
      %v1929 = vtanh.pop %v1868
      %v1930 = vxor.u32 %v1888, 2147483648
      %v1931 = vmul.f32 %v1930, 1.442695
      %v1932 = vpow.pop %v1931
      %v1933 = vadd.f32 %v1932, 1.0
      %v1934 = vrcp.pop %v1933
      %v1935 = vmul.f32 %v1933, %v1934
      %v1936 = vsub.f32 1.0, %v1935
      %v1937 = vmul.f32 %v1934, %v1936
      %v1938 = vadd.f32 %v1934, %v1937
      %vm1939 = vweird.f32 %v1933
      %vm1940 = vweird.f32 %v1934
      %vm1941 = vmor %vm1939, %vm1940
      %v1942 = vsel %vm1941, %v1934, %v1938
      %v1943 = vand.u32 2147483647, %v1933
      %vm1944 = vcmp.eq.f32.partialorder %v1943, 8.507059e+37
      %v1945 = vand.u32 %v1933, 2147483648
      %v1946 = vor.u32 1.1754944e-38, %v1945
      %v1947 = vsel %vm1944, %v1946, %v1942
      %v1948 = vmul.f32 1.0, %v1947
      %v1949 = vmul.f32 %v1928, %v1890
      %v1950 = vmul.f32 %v1909, %v1929
      %v1951 = vadd.f32 %v1949, %v1950
      %v1952 = vtanh.pop %v1951
      %v1953 = vmul.f32 %v1948, %v1952
      %1954 = vst [vmem:[#allocation2] sm:$0x3] %v1953
      %1955 = vst [vmem:[#allocation3] sm:$0x3] %v1951
    $region65: #{tpu_custom_call.1} parent=1 // pred_fallthru
      _
    // Predicated region
    $region66: #{tpu_custom_call.1} parent=1 // pred_check
      %p1956 = pneg %p51
    $region67: #{tpu_custom_call.1} parent=1 // pred_check_branch
      %1958 = sbr.rel (%p1956) target = $region69
    $region68: #{tpu_custom_call.1} parent=1 // pred_region
      %v1959 = vld [vmem:[#allocation2] sm:$0x3]
      %v1960 = vld [vmem:[%s3] sm:$0xff]
      %v1961 = vld [vmem:[%s3 + $0x8] sm:$0xff]
      %v1962 = vld [vmem:[%s3 + $0x10] sm:$0xff]
      %v1963 = vld [vmem:[%s3 + $0x18] sm:$0xff]
      %v1964 = vld [vmem:[%s3 + $0x20] sm:$0xff]
      %v1965 = vld [vmem:[%s3 + $0x28] sm:$0xff]
      %v1966 = vld [vmem:[%s3 + $0x30] sm:$0xff]
      %v1967 = vld [vmem:[%s3 + $0x38] sm:$0xff]
      %v1968 = vld [vmem:[%s4] sm:$0x1]
      %v1970 = vperm.slane %v1968, 0
      %1973 = vrot.lane.b32.xlu0 %v1959, 64
      %v1974 = vpop.permute.xlu0 %1973
      %vm1975 = vcmask 523264
      %v1976 = vsel %vm1975, %v1974, 0
      %1978 = vmatpush.msra.mxu0 0.0
      %1979 = vmatpush.msra.mxu0 0.0
      %1980 = vmatpush.msra.mxu0 0.0
      %1981 = vmatpush.msra.mxu0 0.0
      %1982 = vmatpush.msra.mxu0 0.0
      %1983 = vmatpush.msra.mxu0 0.0
      %1984 = vmatpush.msra.mxu0 0.0
      %1985 = vmatpush.msra.mxu0 0.0
      %1986 = vmatpush.msra.mxu0 %v1967
      %1987 = vmatpush.msra.mxu0 %v1966
      %1988 = vmatpush.msra.mxu0 %v1965
      %1989 = vmatpush.msra.mxu0 %v1964
      %1990 = vmatpush.msra.mxu0 %v1963
      %1991 = vmatpush.msra.mxu0 %v1962
      %1992 = vmatpush.msra.mxu0 %v1961
      %1993 = vmatpush.msra.mxu0 %v1960
      %1994 = vmatmul.f32.gmra.mxu0 %v1976
      %v1995 = vpop.f32.mrf.mxu0
      %v1996 = vadd.f32 %v1970, %v1995
      %1997 = vdwg.mxu0
      %vm1998 = vcmask 9216
      %1999 = vst.msk [vmem:[#allocation9] sm:$0x3] %vm1998, %v1996
    $region69: #{tpu_custom_call.1} parent=1 // pred_fallthru
      _
    // Predicated region
    $region70: #{tpu_custom_call.1} parent=1 // pred_check
      _
    $region71: #{tpu_custom_call.1} parent=1 // pred_check_branch
      %2001 = sbr.rel (0) target = $region73
    $region72: #{tpu_custom_call.1} parent=1 // pred_region
      %2003 = vsyncadd [#allocation6], 0
      %s2005 = sshll.u32 [#allocation9], 4
      %s2006 = int_to_ptr.vmem [resolvable:$true] %s2005
      %s2007 = sshll.u32 %s5, 4
      %s2008 = int_to_ptr.hbm [resolvable:$true] %s2007
      %2010 = dma.vmem_to_hbm [thread:$0]  %s2006, 32, %s2008, [#allocation6]
    $region73: #{tpu_custom_call.1} parent=1 // pred_fallthru
      _
    // Predicated region
    $region74: #{tpu_custom_call.1} parent=1 // pred_check
      _
    $region75: #{tpu_custom_call.1} parent=1 // pred_check_branch
      %2012 = sbr.rel (0) target = $region77
    $region76: #{tpu_custom_call.1} parent=1 // pred_region
      %2014 = dma.done [#allocation6], 32
    $region77: #{tpu_custom_call.1} parent=1 // pred_fallthru
      _
    %2015 = vsyncpa [#allocation5], 1
    %2016 = vsyncpa [#allocation8], 1
    %2017 = vsyncpa [#allocation6], 1

</llo_original>
